<compile_context>
chip_gen: v7x
topology: tpu7x:2x2x1
jax: 0.10.0
libtpu: 0.0.40
codegen_flags: <defaults>
</compile_context>

<pallas_src>
import functools

import jax
import jax.numpy as jnp
import numpy as np
from jax import lax
from jax.experimental import pallas as pl
from jax.experimental.pallas import tpu as pltpu


# ----------------------------------------------------------------------------
# Host-side constant tables (tiny, computed once with numpy)
# ----------------------------------------------------------------------------
def _tap_masks(H, W):
    """(9, H*W) 0/1 masks: tap k=3*dy+dx is valid at output (h, w) iff the
    source pixel (h+dy-1, w+dx-1) lies inside the image (zero padding)."""
    m = np.zeros((9, H * W), np.float32)
    for k in range(9):
        dy, dx = k // 3, k % 3
        for h in range(H):
            hs = h + dy - 1
            if not (0 <= hs < H):
                continue
            for w in range(W):
                ws = w + dx - 1
                if 0 <= ws < W:
                    m[k, h * W + w] = 1.0
    return m


def _stride2_select(H, W):
    """(H*W, Ho*Wo) 0/1 selection matrix: column q = ho*Wo+wo picks flat input
    position (2*ho)*W + 2*wo  (stride-2 subsample as a single MXU matmul)."""
    Ho, Wo = H // 2, W // 2
    s = np.zeros((H * W, Ho * Wo), np.float32)
    for ho in range(Ho):
        for wo in range(Wo):
            s[(2 * ho) * W + 2 * wo, ho * Wo + wo] = 1.0
    return s


# ----------------------------------------------------------------------------
# Fused kernel: whole Block for one batch element
# ----------------------------------------------------------------------------
def _fused_block_kernel(H, W,
                        x_ref, mask_ref, sel_ref,
                        dw1_ref, pw1t_ref, s1_ref, b1_ref,
                        dw2_ref, pw2t_ref, s2_ref, b2_ref,
                        wskipt_ref, ss_ref, bs_ref,
                        o_ref):
    P = H * W
    x = x_ref[0]              # (Cin, P)  lane-dense: spatial flattened in lanes
    masks = mask_ref[...]     # (9, P)
    sel = sel_ref[...]        # (P, Q)

    def shifted(a, k):
        # value at output position p of tap k == a[p + off],
        # off = (dy-1)*W + (dx-1); wrapped lanes are killed by the tap mask.
        dy, dx = k // 3, k % 3
        off = (dy - 1) * W + (dx - 1)
        sh = (-off) % P
        return a if sh == 0 else pltpu.roll(a, shift=sh, axis=1)

    def sep_conv_bn(a, dw, pwt, scale, shift):
        # depthwise 3x3 (pad=1): 9 masked lane-rotated FMAs (XLU + VPU)
        acc = jnp.zeros_like(a)
        for k in range(9):
            acc = acc + shifted(a, k) * masks[k:k + 1, :] * dw[:, k:k + 1]
        # pointwise 1x1 + folded BN: one MXU matmul (Cout, Cin) @ (Cin, P)
        y = jnp.dot(pwt, acc, preferred_element_type=jnp.float32)
        return y * scale + shift

    # rep path: ReLU -> SepConv1 -> BN -> ReLU -> SepConv2 -> BN
    y1 = sep_conv_bn(jnp.maximum(x, 0.0), dw1_ref[...], pw1t_ref[...],
                     s1_ref[...], b1_ref[...])
    y2 = sep_conv_bn(jnp.maximum(y1, 0.0), dw2_ref[...], pw2t_ref[...],
                     s2_ref[...], b2_ref[...])

    # MaxPool(3, stride=2, pad=1): windowed max over the 9 taps (center tap is
    # always valid so init with it), then stride-2 subsample via the 0/1
    # selection matmul — stays in VMEM, no HBM intermediate, no XLA gather.
    neg = jnp.float32(-1e30)
    m = y2
    for k in range(9):
        if k == 4:
            continue
        valid = masks[k:k + 1, :] > 0.5
        m = jnp.maximum(m, jnp.where(valid, shifted(y2, k), neg))
    rep = jnp.dot(m, sel, preferred_element_type=jnp.float32)       # (Cout, Q)

    # skip path: 1x1 conv stride 2 + folded BN (on the raw, un-relu'd input)
    x_sub = jnp.dot(x, sel, preferred_element_type=jnp.float32)     # (Cin, Q)
    skip = jnp.dot(wskipt_ref[...], x_sub,
                   preferred_element_type=jnp.float32)              # (Cout, Q)
    skip = skip * ss_ref[...] + bs_ref[...]

    o_ref[0] = (rep + skip).astype(o_ref.dtype)


# ----------------------------------------------------------------------------
# Block forward (NCHW in / NCHW out, like the PyTorch module)
# ----------------------------------------------------------------------------
@jax.jit
def block_forward(x_nchw, p):
    N, Cin, H, W = x_nchw.shape
    Cmid = p["pw1"].shape[1]
    Cout = p["pw2"].shape[1]
    Ho, Wo = H // 2, W // 2
    P, Q = H * W, Ho * Wo

    x_flat = x_nchw.reshape(N, Cin, P)          # free reshape (NCHW row-major)

    # kernel-layout parameters (tiny, host-side re-layouts)
    dw1 = p["dw1"].T                            # (Cin, 9)
    pw1t = p["pw1"].T                           # (Cmid, Cin)
    s1 = p["scale1"].reshape(Cmid, 1)
    b1 = p["shift1"].reshape(Cmid, 1)
    dw2 = p["dw2"].T                            # (Cmid, 9)
    pw2t = p["pw2"].T                           # (Cout, Cmid)
    s2 = p["scale2"].reshape(Cout, 1)
    b2 = p["shift2"].reshape(Cout, 1)
    wskipt = p["w_skip"].T                      # (Cout, Cin)
    ss = p["scale_s"].reshape(Cout, 1)
    bs = p["shift_s"].reshape(Cout, 1)

    masks = jnp.asarray(_tap_masks(H, W))       # (9, P)
    sel = jnp.asarray(_stride2_select(H, W))    # (P, Q)

    const = lambda n: (0, 0)
    out_flat = pl.pallas_call(
        functools.partial(_fused_block_kernel, H, W),
        out_shape=jax.ShapeDtypeStruct((N, Cout, Q), jnp.float32),
        grid=(N,),
        in_specs=[
            pl.BlockSpec((1, Cin, P), lambda n: (n, 0, 0)),
            pl.BlockSpec((9, P), const),
            pl.BlockSpec((P, Q), const),
            pl.BlockSpec((Cin, 9), const),
            pl.BlockSpec((Cmid, Cin), const),
            pl.BlockSpec((Cmid, 1), const),
            pl.BlockSpec((Cmid, 1), const),
            pl.BlockSpec((Cmid, 9), const),
            pl.BlockSpec((Cout, Cmid), const),
            pl.BlockSpec((Cout, 1), const),
            pl.BlockSpec((Cout, 1), const),
            pl.BlockSpec((Cout, Cin), const),
            pl.BlockSpec((Cout, 1), const),
            pl.BlockSpec((Cout, 1), const),
        ],
        out_specs=pl.BlockSpec((1, Cout, Q), lambda n: (n, 0, 0)),
        compiler_params=pltpu.CompilerParams(
            dimension_semantics=("parallel",)),   # batch -> both TCs on v7x
    )(x_flat, masks, sel, dw1, pw1t, s1, b1, dw2, pw2t, s2, b2, wskipt, ss, bs)

    return out_flat.reshape(N, Cout, Ho, Wo)


# ----------------------------------------------------------------------------
# Pure-JAX reference (for correctness check only)
# ----------------------------------------------------------------------------
def reference_forward(x_nchw, p):
    x = jnp.transpose(x_nchw, (0, 2, 3, 1))

    def sep(z, dw, pw, scale, shift):
        Cin = z.shape[-1]
        z = jnp.maximum(z, 0.0)
        dwk = dw.reshape(3, 3, 1, Cin)
        y = lax.conv_general_dilated(
            z, dwk, (1, 1), ((1, 1), (1, 1)),
            dimension_numbers=("NHWC", "HWIO", "NHWC"),
            feature_group_count=Cin)
        y = jnp.einsum("nhwc,cd->nhwd", y, pw)
        return y * scale[0] + shift[0]

    y = sep(x, p["dw1"], p["pw1"], p["scale1"], p["shift1"])
    y = sep(y, p["dw2"], p["pw2"], p["scale2"], p["shift2"])
    y = lax.reduce_window(y, -jnp.inf, lax.max, (1, 3, 3, 1), (1, 2, 2, 1),
                          ((0, 0), (1, 1), (1, 1), (0, 0)))
    s = jnp.einsum("nhwc,cd->nhwd", x[:, ::2, ::2, :], p["w_skip"])
    s = s * p["scale_s"][0] + p["shift_s"][0]
    return jnp.transpose(y + s, (0, 3, 1, 2))


# ----------------------------------------------------------------------------
# Deterministic parameter construction
# ----------------------------------------------------------------------------
def fold_bn(gamma, beta, mean, var, eps=1e-5):
    scale = gamma / jnp.sqrt(var + eps)
    shift = beta - mean * scale
    return scale.reshape(1, -1), shift.reshape(1, -1)


def make_params(cin, cout, key):
    ks = jax.random.split(key, 12)

    def bn_params(c, k0, k1, k2, k3):
        gamma = 1.0 + 0.1 * jax.random.normal(k0, (c,), jnp.float32)
        beta = 0.1 * jax.random.normal(k1, (c,), jnp.float32)
        mean = 0.1 * jax.random.normal(k2, (c,), jnp.float32)
        var = jnp.abs(jax.random.normal(k3, (c,), jnp.float32)) + 0.5
        return fold_bn(gamma, beta, mean, var)

    p = {}
    # SepConv 1: depthwise (9, cin) [k = 3*dy + dx], pointwise (cin, cout)
    p["dw1"] = 0.2 * jax.random.normal(ks[0], (9, cin), jnp.float32)
    p["pw1"] = 0.2 * jax.random.normal(ks[1], (cin, cout), jnp.float32)
    p["scale1"], p["shift1"] = bn_params(cout, ks[2], ks[3], ks[4], ks[5])
    # SepConv 2: cout -> cout
    p["dw2"] = 0.2 * jax.random.normal(ks[6], (9, cout), jnp.float32)
    p["pw2"] = 0.2 * jax.random.normal(ks[7], (cout, cout), jnp.float32)
    p["scale2"], p["shift2"] = bn_params(cout, ks[8], ks[9], ks[10], ks[11])
    # skip: 1x1 conv (cin, cout) + BN
    k_extra = jax.random.split(ks[11], 6)
    p["w_skip"] = 0.2 * jax.random.normal(k_extra[0], (cin, cout), jnp.float32)
    p["scale_s"], p["shift_s"] = bn_params(cout, k_extra[1], k_extra[2],
                                           k_extra[3], k_extra[4])
    return p


if __name__ == "__main__":
    # TODO(synk): BatchNorm training-mode batch statistics are not modeled;
    # BN is applied in eval mode (running stats folded into scale/shift).
    N, Cin, Cout, H, W = 2, 4, 8, 16, 16
    key = jax.random.PRNGKey(0)
    kx, kp = jax.random.split(key)
    x = jax.random.normal(kx, (N, Cin, H, W), jnp.float32)       # NCHW input
    params = make_params(Cin, Cout, kp)

    out = jax.block_until_ready(block_forward(x, params))
    ref = jax.block_until_ready(reference_forward(x, params))

    assert out.shape == (N, Cout, H // 2, W // 2), out.shape
    np.testing.assert_allclose(np.asarray(out), np.asarray(ref),
                               rtol=1e-4, atol=1e-4)
    print("KERNEL_OK")
</pallas_src>

<mosaic_0001>
module attributes {stable_mosaic.version = 11 : i64} {
  func.func @_fused_block_kernel(%arg0: i32, %arg1: memref<1x4x256xf32, #tpu.memory_space<vmem>>, %arg2: memref<9x256xf32, #tpu.memory_space<vmem>>, %arg3: memref<256x64xf32, #tpu.memory_space<vmem>>, %arg4: memref<4x9xf32, #tpu.memory_space<vmem>>, %arg5: memref<8x4xf32, #tpu.memory_space<vmem>>, %arg6: memref<8x1xf32, #tpu.memory_space<vmem>>, %arg7: memref<8x1xf32, #tpu.memory_space<vmem>>, %arg8: memref<8x9xf32, #tpu.memory_space<vmem>>, %arg9: memref<8x8xf32, #tpu.memory_space<vmem>>, %arg10: memref<8x1xf32, #tpu.memory_space<vmem>>, %arg11: memref<8x1xf32, #tpu.memory_space<vmem>>, %arg12: memref<8x4xf32, #tpu.memory_space<vmem>>, %arg13: memref<8x1xf32, #tpu.memory_space<vmem>>, %arg14: memref<8x1xf32, #tpu.memory_space<vmem>>, %arg15: memref<1x8x64xf32, #tpu.memory_space<vmem>>) attributes {dimension_semantics = [#tpu.dimension_semantics<parallel>], iteration_bounds = array<i64: 2>, scalar_prefetch = 0 : i64, scratch_operands = 0 : i64, tpu.core_type = #tpu.core_type<tc>, window_params = [{transform_indices = @transform_0, window_bounds = array<i64: 1, 4, 256>}, {pipeline_mode = #tpu.pipeline_mode<synchronous>, transform_indices = @transform_1, window_bounds = array<i64: 9, 256>}, {pipeline_mode = #tpu.pipeline_mode<synchronous>, transform_indices = @transform_2, window_bounds = array<i64: 256, 64>}, {pipeline_mode = #tpu.pipeline_mode<synchronous>, transform_indices = @transform_3, window_bounds = array<i64: 4, 9>}, {pipeline_mode = #tpu.pipeline_mode<synchronous>, transform_indices = @transform_4, window_bounds = array<i64: 8, 4>}, {pipeline_mode = #tpu.pipeline_mode<synchronous>, transform_indices = @transform_5, window_bounds = array<i64: 8, 1>}, {pipeline_mode = #tpu.pipeline_mode<synchronous>, transform_indices = @transform_6, window_bounds = array<i64: 8, 1>}, {pipeline_mode = #tpu.pipeline_mode<synchronous>, transform_indices = @transform_7, window_bounds = array<i64: 8, 9>}, {pipeline_mode = #tpu.pipeline_mode<synchronous>, transform_indices = @transform_8, window_bounds = array<i64: 8, 8>}, {pipeline_mode = #tpu.pipeline_mode<synchronous>, transform_indices = @transform_9, window_bounds = array<i64: 8, 1>}, {pipeline_mode = #tpu.pipeline_mode<synchronous>, transform_indices = @transform_10, window_bounds = array<i64: 8, 1>}, {pipeline_mode = #tpu.pipeline_mode<synchronous>, transform_indices = @transform_11, window_bounds = array<i64: 8, 4>}, {pipeline_mode = #tpu.pipeline_mode<synchronous>, transform_indices = @transform_12, window_bounds = array<i64: 8, 1>}, {pipeline_mode = #tpu.pipeline_mode<synchronous>, transform_indices = @transform_13, window_bounds = array<i64: 8, 1>}, {transform_indices = @transform_14, window_bounds = array<i64: 1, 8, 64>}]} {
    %c0 = arith.constant 0 : index
    %c0_0 = arith.constant 0 : index
    %c0_1 = arith.constant 0 : index
    %0 = vector.load %arg1[%c0, %c0_0, %c0_1] : memref<1x4x256xf32, #tpu.memory_space<vmem>>, vector<1x4x256xf32>
    %1 = vector.shape_cast %0 : vector<1x4x256xf32> to vector<4x256xf32>
    %c0_2 = arith.constant 0 : index
    %c0_3 = arith.constant 0 : index
    %2 = vector.load %arg2[%c0_2, %c0_3] : memref<9x256xf32, #tpu.memory_space<vmem>>, vector<9x256xf32>
    %c0_4 = arith.constant 0 : index
    %c0_5 = arith.constant 0 : index
    %3 = vector.load %arg3[%c0_4, %c0_5] : memref<256x64xf32, #tpu.memory_space<vmem>>, vector<256x64xf32>
    %cst = arith.constant 0.000000e+00 : f32
    %4 = vector.broadcast %cst : f32 to vector<4x256xf32>
    %5 = arith.maximumf %1, %4 : vector<4x256xf32>
    %c0_6 = arith.constant 0 : index
    %c0_7 = arith.constant 0 : index
    %6 = vector.load %arg4[%c0_6, %c0_7] : memref<4x9xf32, #tpu.memory_space<vmem>>, vector<4x9xf32>
    %c0_8 = arith.constant 0 : index
    %c0_9 = arith.constant 0 : index
    %7 = vector.load %arg5[%c0_8, %c0_9] : memref<8x4xf32, #tpu.memory_space<vmem>>, vector<8x4xf32>
    %c0_10 = arith.constant 0 : index
    %c0_11 = arith.constant 0 : index
    %8 = vector.load %arg6[%c0_10, %c0_11] : memref<8x1xf32, #tpu.memory_space<vmem>>, vector<8x1xf32>
    %c0_12 = arith.constant 0 : index
    %c0_13 = arith.constant 0 : index
    %9 = vector.load %arg7[%c0_12, %c0_13] : memref<8x1xf32, #tpu.memory_space<vmem>>, vector<8x1xf32>
    %cst_14 = arith.constant 0.000000e+00 : f32
    %10 = vector.broadcast %cst_14 : f32 to vector<4x256xf32>
    %c17_i32 = arith.constant 17 : i32
    %11 = tpu.dynamic_rotate %5 by %c17_i32 dim 1 : vector<4x256xf32>, i32 -> vector<4x256xf32>
    %12 = vector.extract_strided_slice %2 {offsets = [0, 0], sizes = [1, 256], strides = [1, 1]} : vector<9x256xf32> to vector<1x256xf32>
    %13 = vector.broadcast %12 : vector<1x256xf32> to vector<4x256xf32>
    %14 = arith.mulf %11, %13 : vector<4x256xf32>
    %15 = vector.extract_strided_slice %6 {offsets = [0, 0], sizes = [4, 1], strides = [1, 1]} : vector<4x9xf32> to vector<4x1xf32>
    %16 = vector.broadcast %15 : vector<4x1xf32> to vector<4x256xf32>
    %17 = arith.mulf %14, %16 : vector<4x256xf32>
    %18 = arith.addf %10, %17 : vector<4x256xf32>
    %c16_i32 = arith.constant 16 : i32
    %19 = tpu.dynamic_rotate %5 by %c16_i32 dim 1 : vector<4x256xf32>, i32 -> vector<4x256xf32>
    %20 = vector.extract_strided_slice %2 {offsets = [1, 0], sizes = [1, 256], strides = [1, 1]} : vector<9x256xf32> to vector<1x256xf32>
    %21 = vector.broadcast %20 : vector<1x256xf32> to vector<4x256xf32>
    %22 = arith.mulf %19, %21 : vector<4x256xf32>
    %23 = vector.extract_strided_slice %6 {offsets = [0, 1], sizes = [4, 1], strides = [1, 1]} : vector<4x9xf32> to vector<4x1xf32>
    %24 = vector.broadcast %23 : vector<4x1xf32> to vector<4x256xf32>
    %25 = arith.mulf %22, %24 : vector<4x256xf32>
    %26 = arith.addf %18, %25 : vector<4x256xf32>
    %c15_i32 = arith.constant 15 : i32
    %27 = tpu.dynamic_rotate %5 by %c15_i32 dim 1 : vector<4x256xf32>, i32 -> vector<4x256xf32>
    %28 = vector.extract_strided_slice %2 {offsets = [2, 0], sizes = [1, 256], strides = [1, 1]} : vector<9x256xf32> to vector<1x256xf32>
    %29 = vector.broadcast %28 : vector<1x256xf32> to vector<4x256xf32>
    %30 = arith.mulf %27, %29 : vector<4x256xf32>
    %31 = vector.extract_strided_slice %6 {offsets = [0, 2], sizes = [4, 1], strides = [1, 1]} : vector<4x9xf32> to vector<4x1xf32>
    %32 = vector.broadcast %31 : vector<4x1xf32> to vector<4x256xf32>
    %33 = arith.mulf %30, %32 : vector<4x256xf32>
    %34 = arith.addf %26, %33 : vector<4x256xf32>
    %c1_i32 = arith.constant 1 : i32
    %35 = tpu.dynamic_rotate %5 by %c1_i32 dim 1 : vector<4x256xf32>, i32 -> vector<4x256xf32>
    %36 = vector.extract_strided_slice %2 {offsets = [3, 0], sizes = [1, 256], strides = [1, 1]} : vector<9x256xf32> to vector<1x256xf32>
    %37 = vector.broadcast %36 : vector<1x256xf32> to vector<4x256xf32>
    %38 = arith.mulf %35, %37 : vector<4x256xf32>
    %39 = vector.extract_strided_slice %6 {offsets = [0, 3], sizes = [4, 1], strides = [1, 1]} : vector<4x9xf32> to vector<4x1xf32>
    %40 = vector.broadcast %39 : vector<4x1xf32> to vector<4x256xf32>
    %41 = arith.mulf %38, %40 : vector<4x256xf32>
    %42 = arith.addf %34, %41 : vector<4x256xf32>
    %43 = vector.extract_strided_slice %2 {offsets = [4, 0], sizes = [1, 256], strides = [1, 1]} : vector<9x256xf32> to vector<1x256xf32>
    %44 = vector.broadcast %43 : vector<1x256xf32> to vector<4x256xf32>
    %45 = arith.mulf %5, %44 : vector<4x256xf32>
    %46 = vector.extract_strided_slice %6 {offsets = [0, 4], sizes = [4, 1], strides = [1, 1]} : vector<4x9xf32> to vector<4x1xf32>
    %47 = vector.broadcast %46 : vector<4x1xf32> to vector<4x256xf32>
    %48 = arith.mulf %45, %47 : vector<4x256xf32>
    %49 = arith.addf %42, %48 : vector<4x256xf32>
    %c255_i32 = arith.constant 255 : i32
    %50 = tpu.dynamic_rotate %5 by %c255_i32 dim 1 : vector<4x256xf32>, i32 -> vector<4x256xf32>
    %51 = vector.extract_strided_slice %2 {offsets = [5, 0], sizes = [1, 256], strides = [1, 1]} : vector<9x256xf32> to vector<1x256xf32>
    %52 = vector.broadcast %51 : vector<1x256xf32> to vector<4x256xf32>
    %53 = arith.mulf %50, %52 : vector<4x256xf32>
    %54 = vector.extract_strided_slice %6 {offsets = [0, 5], sizes = [4, 1], strides = [1, 1]} : vector<4x9xf32> to vector<4x1xf32>
    %55 = vector.broadcast %54 : vector<4x1xf32> to vector<4x256xf32>
    %56 = arith.mulf %53, %55 : vector<4x256xf32>
    %57 = arith.addf %49, %56 : vector<4x256xf32>
    %c241_i32 = arith.constant 241 : i32
    %58 = tpu.dynamic_rotate %5 by %c241_i32 dim 1 : vector<4x256xf32>, i32 -> vector<4x256xf32>
    %59 = vector.extract_strided_slice %2 {offsets = [6, 0], sizes = [1, 256], strides = [1, 1]} : vector<9x256xf32> to vector<1x256xf32>
    %60 = vector.broadcast %59 : vector<1x256xf32> to vector<4x256xf32>
    %61 = arith.mulf %58, %60 : vector<4x256xf32>
    %62 = vector.extract_strided_slice %6 {offsets = [0, 6], sizes = [4, 1], strides = [1, 1]} : vector<4x9xf32> to vector<4x1xf32>
    %63 = vector.broadcast %62 : vector<4x1xf32> to vector<4x256xf32>
    %64 = arith.mulf %61, %63 : vector<4x256xf32>
    %65 = arith.addf %57, %64 : vector<4x256xf32>
    %c240_i32 = arith.constant 240 : i32
    %66 = tpu.dynamic_rotate %5 by %c240_i32 dim 1 : vector<4x256xf32>, i32 -> vector<4x256xf32>
    %67 = vector.extract_strided_slice %2 {offsets = [7, 0], sizes = [1, 256], strides = [1, 1]} : vector<9x256xf32> to vector<1x256xf32>
    %68 = vector.broadcast %67 : vector<1x256xf32> to vector<4x256xf32>
    %69 = arith.mulf %66, %68 : vector<4x256xf32>
    %70 = vector.extract_strided_slice %6 {offsets = [0, 7], sizes = [4, 1], strides = [1, 1]} : vector<4x9xf32> to vector<4x1xf32>
    %71 = vector.broadcast %70 : vector<4x1xf32> to vector<4x256xf32>
    %72 = arith.mulf %69, %71 : vector<4x256xf32>
    %73 = arith.addf %65, %72 : vector<4x256xf32>
    %c239_i32 = arith.constant 239 : i32
    %74 = tpu.dynamic_rotate %5 by %c239_i32 dim 1 : vector<4x256xf32>, i32 -> vector<4x256xf32>
    %75 = vector.extract_strided_slice %2 {offsets = [8, 0], sizes = [1, 256], strides = [1, 1]} : vector<9x256xf32> to vector<1x256xf32>
    %76 = vector.broadcast %75 : vector<1x256xf32> to vector<4x256xf32>
    %77 = arith.mulf %74, %76 : vector<4x256xf32>
    %78 = vector.extract_strided_slice %6 {offsets = [0, 8], sizes = [4, 1], strides = [1, 1]} : vector<4x9xf32> to vector<4x1xf32>
    %79 = vector.broadcast %78 : vector<4x1xf32> to vector<4x256xf32>
    %80 = arith.mulf %77, %79 : vector<4x256xf32>
    %81 = arith.addf %73, %80 : vector<4x256xf32>
    %cst_15 = arith.constant dense<0.000000e+00> : vector<8x256xf32>
    %82 = tpu.matmul %7, %81, %cst_15 {dimension_numbers = #tpu.dot_dimension_numbers<[1], [0], [0], [1], [0, 0, 1, 1], [], []>} : vector<8x4xf32>, vector<4x256xf32>, vector<8x256xf32> -> vector<8x256xf32>
    %83 = vector.broadcast %8 : vector<8x1xf32> to vector<8x256xf32>
    %84 = arith.mulf %82, %83 : vector<8x256xf32>
    %85 = vector.broadcast %9 : vector<8x1xf32> to vector<8x256xf32>
    %86 = arith.addf %84, %85 : vector<8x256xf32>
    %cst_16 = arith.constant 0.000000e+00 : f32
    %87 = vector.broadcast %cst_16 : f32 to vector<8x256xf32>
    %88 = arith.maximumf %86, %87 : vector<8x256xf32>
    %c0_17 = arith.constant 0 : index
    %c0_18 = arith.constant 0 : index
    %89 = vector.load %arg8[%c0_17, %c0_18] : memref<8x9xf32, #tpu.memory_space<vmem>>, vector<8x9xf32>
    %c0_19 = arith.constant 0 : index
    %c0_20 = arith.constant 0 : index
    %90 = vector.load %arg9[%c0_19, %c0_20] : memref<8x8xf32, #tpu.memory_space<vmem>>, vector<8x8xf32>
    %c0_21 = arith.constant 0 : index
    %c0_22 = arith.constant 0 : index
    %91 = vector.load %arg10[%c0_21, %c0_22] : memref<8x1xf32, #tpu.memory_space<vmem>>, vector<8x1xf32>
    %c0_23 = arith.constant 0 : index
    %c0_24 = arith.constant 0 : index
    %92 = vector.load %arg11[%c0_23, %c0_24] : memref<8x1xf32, #tpu.memory_space<vmem>>, vector<8x1xf32>
    %cst_25 = arith.constant 0.000000e+00 : f32
    %93 = vector.broadcast %cst_25 : f32 to vector<8x256xf32>
    %c17_i32_26 = arith.constant 17 : i32
    %94 = tpu.dynamic_rotate %88 by %c17_i32_26 dim 1 : vector<8x256xf32>, i32 -> vector<8x256xf32>
    %95 = vector.extract_strided_slice %2 {offsets = [0, 0], sizes = [1, 256], strides = [1, 1]} : vector<9x256xf32> to vector<1x256xf32>
    %96 = vector.broadcast %95 : vector<1x256xf32> to vector<8x256xf32>
    %97 = arith.mulf %94, %96 : vector<8x256xf32>
    %98 = vector.extract_strided_slice %89 {offsets = [0, 0], sizes = [8, 1], strides = [1, 1]} : vector<8x9xf32> to vector<8x1xf32>
    %99 = vector.broadcast %98 : vector<8x1xf32> to vector<8x256xf32>
    %100 = arith.mulf %97, %99 : vector<8x256xf32>
    %101 = arith.addf %93, %100 : vector<8x256xf32>
    %c16_i32_27 = arith.constant 16 : i32
    %102 = tpu.dynamic_rotate %88 by %c16_i32_27 dim 1 : vector<8x256xf32>, i32 -> vector<8x256xf32>
    %103 = vector.extract_strided_slice %2 {offsets = [1, 0], sizes = [1, 256], strides = [1, 1]} : vector<9x256xf32> to vector<1x256xf32>
    %104 = vector.broadcast %103 : vector<1x256xf32> to vector<8x256xf32>
    %105 = arith.mulf %102, %104 : vector<8x256xf32>
    %106 = vector.extract_strided_slice %89 {offsets = [0, 1], sizes = [8, 1], strides = [1, 1]} : vector<8x9xf32> to vector<8x1xf32>
    %107 = vector.broadcast %106 : vector<8x1xf32> to vector<8x256xf32>
    %108 = arith.mulf %105, %107 : vector<8x256xf32>
    %109 = arith.addf %101, %108 : vector<8x256xf32>
    %c15_i32_28 = arith.constant 15 : i32
    %110 = tpu.dynamic_rotate %88 by %c15_i32_28 dim 1 : vector<8x256xf32>, i32 -> vector<8x256xf32>
    %111 = vector.extract_strided_slice %2 {offsets = [2, 0], sizes = [1, 256], strides = [1, 1]} : vector<9x256xf32> to vector<1x256xf32>
    %112 = vector.broadcast %111 : vector<1x256xf32> to vector<8x256xf32>
    %113 = arith.mulf %110, %112 : vector<8x256xf32>
    %114 = vector.extract_strided_slice %89 {offsets = [0, 2], sizes = [8, 1], strides = [1, 1]} : vector<8x9xf32> to vector<8x1xf32>
    %115 = vector.broadcast %114 : vector<8x1xf32> to vector<8x256xf32>
    %116 = arith.mulf %113, %115 : vector<8x256xf32>
    %117 = arith.addf %109, %116 : vector<8x256xf32>
    %c1_i32_29 = arith.constant 1 : i32
    %118 = tpu.dynamic_rotate %88 by %c1_i32_29 dim 1 : vector<8x256xf32>, i32 -> vector<8x256xf32>
    %119 = vector.extract_strided_slice %2 {offsets = [3, 0], sizes = [1, 256], strides = [1, 1]} : vector<9x256xf32> to vector<1x256xf32>
    %120 = vector.broadcast %119 : vector<1x256xf32> to vector<8x256xf32>
    %121 = arith.mulf %118, %120 : vector<8x256xf32>
    %122 = vector.extract_strided_slice %89 {offsets = [0, 3], sizes = [8, 1], strides = [1, 1]} : vector<8x9xf32> to vector<8x1xf32>
    %123 = vector.broadcast %122 : vector<8x1xf32> to vector<8x256xf32>
    %124 = arith.mulf %121, %123 : vector<8x256xf32>
    %125 = arith.addf %117, %124 : vector<8x256xf32>
    %126 = vector.extract_strided_slice %2 {offsets = [4, 0], sizes = [1, 256], strides = [1, 1]} : vector<9x256xf32> to vector<1x256xf32>
    %127 = vector.broadcast %126 : vector<1x256xf32> to vector<8x256xf32>
    %128 = arith.mulf %88, %127 : vector<8x256xf32>
    %129 = vector.extract_strided_slice %89 {offsets = [0, 4], sizes = [8, 1], strides = [1, 1]} : vector<8x9xf32> to vector<8x1xf32>
    %130 = vector.broadcast %129 : vector<8x1xf32> to vector<8x256xf32>
    %131 = arith.mulf %128, %130 : vector<8x256xf32>
    %132 = arith.addf %125, %131 : vector<8x256xf32>
    %c255_i32_30 = arith.constant 255 : i32
    %133 = tpu.dynamic_rotate %88 by %c255_i32_30 dim 1 : vector<8x256xf32>, i32 -> vector<8x256xf32>
    %134 = vector.extract_strided_slice %2 {offsets = [5, 0], sizes = [1, 256], strides = [1, 1]} : vector<9x256xf32> to vector<1x256xf32>
    %135 = vector.broadcast %134 : vector<1x256xf32> to vector<8x256xf32>
    %136 = arith.mulf %133, %135 : vector<8x256xf32>
    %137 = vector.extract_strided_slice %89 {offsets = [0, 5], sizes = [8, 1], strides = [1, 1]} : vector<8x9xf32> to vector<8x1xf32>
    %138 = vector.broadcast %137 : vector<8x1xf32> to vector<8x256xf32>
    %139 = arith.mulf %136, %138 : vector<8x256xf32>
    %140 = arith.addf %132, %139 : vector<8x256xf32>
    %c241_i32_31 = arith.constant 241 : i32
    %141 = tpu.dynamic_rotate %88 by %c241_i32_31 dim 1 : vector<8x256xf32>, i32 -> vector<8x256xf32>
    %142 = vector.extract_strided_slice %2 {offsets = [6, 0], sizes = [1, 256], strides = [1, 1]} : vector<9x256xf32> to vector<1x256xf32>
    %143 = vector.broadcast %142 : vector<1x256xf32> to vector<8x256xf32>
    %144 = arith.mulf %141, %143 : vector<8x256xf32>
    %145 = vector.extract_strided_slice %89 {offsets = [0, 6], sizes = [8, 1], strides = [1, 1]} : vector<8x9xf32> to vector<8x1xf32>
    %146 = vector.broadcast %145 : vector<8x1xf32> to vector<8x256xf32>
    %147 = arith.mulf %144, %146 : vector<8x256xf32>
    %148 = arith.addf %140, %147 : vector<8x256xf32>
    %c240_i32_32 = arith.constant 240 : i32
    %149 = tpu.dynamic_rotate %88 by %c240_i32_32 dim 1 : vector<8x256xf32>, i32 -> vector<8x256xf32>
    %150 = vector.extract_strided_slice %2 {offsets = [7, 0], sizes = [1, 256], strides = [1, 1]} : vector<9x256xf32> to vector<1x256xf32>
    %151 = vector.broadcast %150 : vector<1x256xf32> to vector<8x256xf32>
    %152 = arith.mulf %149, %151 : vector<8x256xf32>
    %153 = vector.extract_strided_slice %89 {offsets = [0, 7], sizes = [8, 1], strides = [1, 1]} : vector<8x9xf32> to vector<8x1xf32>
    %154 = vector.broadcast %153 : vector<8x1xf32> to vector<8x256xf32>
    %155 = arith.mulf %152, %154 : vector<8x256xf32>
    %156 = arith.addf %148, %155 : vector<8x256xf32>
    %c239_i32_33 = arith.constant 239 : i32
    %157 = tpu.dynamic_rotate %88 by %c239_i32_33 dim 1 : vector<8x256xf32>, i32 -> vector<8x256xf32>
    %158 = vector.extract_strided_slice %2 {offsets = [8, 0], sizes = [1, 256], strides = [1, 1]} : vector<9x256xf32> to vector<1x256xf32>
    %159 = vector.broadcast %158 : vector<1x256xf32> to vector<8x256xf32>
    %160 = arith.mulf %157, %159 : vector<8x256xf32>
    %161 = vector.extract_strided_slice %89 {offsets = [0, 8], sizes = [8, 1], strides = [1, 1]} : vector<8x9xf32> to vector<8x1xf32>
    %162 = vector.broadcast %161 : vector<8x1xf32> to vector<8x256xf32>
    %163 = arith.mulf %160, %162 : vector<8x256xf32>
    %164 = arith.addf %156, %163 : vector<8x256xf32>
    %cst_34 = arith.constant dense<0.000000e+00> : vector<8x256xf32>
    %165 = tpu.matmul %90, %164, %cst_34 {dimension_numbers = #tpu.dot_dimension_numbers<[1], [0], [0], [1], [0, 0, 1, 1], [], []>} : vector<8x8xf32>, vector<8x256xf32>, vector<8x256xf32> -> vector<8x256xf32>
    %166 = vector.broadcast %91 : vector<8x1xf32> to vector<8x256xf32>
    %167 = arith.mulf %165, %166 : vector<8x256xf32>
    %168 = vector.broadcast %92 : vector<8x1xf32> to vector<8x256xf32>
    %169 = arith.addf %167, %168 : vector<8x256xf32>
    %170 = vector.extract_strided_slice %2 {offsets = [0, 0], sizes = [1, 256], strides = [1, 1]} : vector<9x256xf32> to vector<1x256xf32>
    %cst_35 = arith.constant 5.000000e-01 : f32
    %171 = vector.broadcast %cst_35 : f32 to vector<1x256xf32>
    %172 = arith.cmpf ogt, %170, %171 : vector<1x256xf32>
    %c17_i32_36 = arith.constant 17 : i32
    %173 = tpu.dynamic_rotate %169 by %c17_i32_36 dim 1 : vector<8x256xf32>, i32 -> vector<8x256xf32>
    %cst_37 = arith.constant -1.000000e+30 : f32
    %174 = vector.shape_cast %172 : vector<1x256xi1> to vector<1x256xi1>
    %175 = vector.broadcast %174 : vector<1x256xi1> to vector<8x256xi1>
    %176 = vector.broadcast %cst_37 : f32 to vector<8x256xf32>
    %177 = arith.select %175, %173, %176 : vector<8x256xi1>, vector<8x256xf32>
    %178 = arith.maximumf %169, %177 : vector<8x256xf32>
    %179 = vector.extract_strided_slice %2 {offsets = [1, 0], sizes = [1, 256], strides = [1, 1]} : vector<9x256xf32> to vector<1x256xf32>
    %cst_38 = arith.constant 5.000000e-01 : f32
    %180 = vector.broadcast %cst_38 : f32 to vector<1x256xf32>
    %181 = arith.cmpf ogt, %179, %180 : vector<1x256xf32>
    %c16_i32_39 = arith.constant 16 : i32
    %182 = tpu.dynamic_rotate %169 by %c16_i32_39 dim 1 : vector<8x256xf32>, i32 -> vector<8x256xf32>
    %cst_40 = arith.constant -1.000000e+30 : f32
    %183 = vector.shape_cast %181 : vector<1x256xi1> to vector<1x256xi1>
    %184 = vector.broadcast %183 : vector<1x256xi1> to vector<8x256xi1>
    %185 = vector.broadcast %cst_40 : f32 to vector<8x256xf32>
    %186 = arith.select %184, %182, %185 : vector<8x256xi1>, vector<8x256xf32>
    %187 = arith.maximumf %178, %186 : vector<8x256xf32>
    %188 = vector.extract_strided_slice %2 {offsets = [2, 0], sizes = [1, 256], strides = [1, 1]} : vector<9x256xf32> to vector<1x256xf32>
    %cst_41 = arith.constant 5.000000e-01 : f32
    %189 = vector.broadcast %cst_41 : f32 to vector<1x256xf32>
    %190 = arith.cmpf ogt, %188, %189 : vector<1x256xf32>
    %c15_i32_42 = arith.constant 15 : i32
    %191 = tpu.dynamic_rotate %169 by %c15_i32_42 dim 1 : vector<8x256xf32>, i32 -> vector<8x256xf32>
    %cst_43 = arith.constant -1.000000e+30 : f32
    %192 = vector.shape_cast %190 : vector<1x256xi1> to vector<1x256xi1>
    %193 = vector.broadcast %192 : vector<1x256xi1> to vector<8x256xi1>
    %194 = vector.broadcast %cst_43 : f32 to vector<8x256xf32>
    %195 = arith.select %193, %191, %194 : vector<8x256xi1>, vector<8x256xf32>
    %196 = arith.maximumf %187, %195 : vector<8x256xf32>
    %197 = vector.extract_strided_slice %2 {offsets = [3, 0], sizes = [1, 256], strides = [1, 1]} : vector<9x256xf32> to vector<1x256xf32>
    %cst_44 = arith.constant 5.000000e-01 : f32
    %198 = vector.broadcast %cst_44 : f32 to vector<1x256xf32>
    %199 = arith.cmpf ogt, %197, %198 : vector<1x256xf32>
    %c1_i32_45 = arith.constant 1 : i32
    %200 = tpu.dynamic_rotate %169 by %c1_i32_45 dim 1 : vector<8x256xf32>, i32 -> vector<8x256xf32>
    %cst_46 = arith.constant -1.000000e+30 : f32
    %201 = vector.shape_cast %199 : vector<1x256xi1> to vector<1x256xi1>
    %202 = vector.broadcast %201 : vector<1x256xi1> to vector<8x256xi1>
    %203 = vector.broadcast %cst_46 : f32 to vector<8x256xf32>
    %204 = arith.select %202, %200, %203 : vector<8x256xi1>, vector<8x256xf32>
    %205 = arith.maximumf %196, %204 : vector<8x256xf32>
    %206 = vector.extract_strided_slice %2 {offsets = [5, 0], sizes = [1, 256], strides = [1, 1]} : vector<9x256xf32> to vector<1x256xf32>
    %cst_47 = arith.constant 5.000000e-01 : f32
    %207 = vector.broadcast %cst_47 : f32 to vector<1x256xf32>
    %208 = arith.cmpf ogt, %206, %207 : vector<1x256xf32>
    %c255_i32_48 = arith.constant 255 : i32
    %209 = tpu.dynamic_rotate %169 by %c255_i32_48 dim 1 : vector<8x256xf32>, i32 -> vector<8x256xf32>
    %cst_49 = arith.constant -1.000000e+30 : f32
    %210 = vector.shape_cast %208 : vector<1x256xi1> to vector<1x256xi1>
    %211 = vector.broadcast %210 : vector<1x256xi1> to vector<8x256xi1>
    %212 = vector.broadcast %cst_49 : f32 to vector<8x256xf32>
    %213 = arith.select %211, %209, %212 : vector<8x256xi1>, vector<8x256xf32>
    %214 = arith.maximumf %205, %213 : vector<8x256xf32>
    %215 = vector.extract_strided_slice %2 {offsets = [6, 0], sizes = [1, 256], strides = [1, 1]} : vector<9x256xf32> to vector<1x256xf32>
    %cst_50 = arith.constant 5.000000e-01 : f32
    %216 = vector.broadcast %cst_50 : f32 to vector<1x256xf32>
    %217 = arith.cmpf ogt, %215, %216 : vector<1x256xf32>
    %c241_i32_51 = arith.constant 241 : i32
    %218 = tpu.dynamic_rotate %169 by %c241_i32_51 dim 1 : vector<8x256xf32>, i32 -> vector<8x256xf32>
    %cst_52 = arith.constant -1.000000e+30 : f32
    %219 = vector.shape_cast %217 : vector<1x256xi1> to vector<1x256xi1>
    %220 = vector.broadcast %219 : vector<1x256xi1> to vector<8x256xi1>
    %221 = vector.broadcast %cst_52 : f32 to vector<8x256xf32>
    %222 = arith.select %220, %218, %221 : vector<8x256xi1>, vector<8x256xf32>
    %223 = arith.maximumf %214, %222 : vector<8x256xf32>
    %224 = vector.extract_strided_slice %2 {offsets = [7, 0], sizes = [1, 256], strides = [1, 1]} : vector<9x256xf32> to vector<1x256xf32>
    %cst_53 = arith.constant 5.000000e-01 : f32
    %225 = vector.broadcast %cst_53 : f32 to vector<1x256xf32>
    %226 = arith.cmpf ogt, %224, %225 : vector<1x256xf32>
    %c240_i32_54 = arith.constant 240 : i32
    %227 = tpu.dynamic_rotate %169 by %c240_i32_54 dim 1 : vector<8x256xf32>, i32 -> vector<8x256xf32>
    %cst_55 = arith.constant -1.000000e+30 : f32
    %228 = vector.shape_cast %226 : vector<1x256xi1> to vector<1x256xi1>
    %229 = vector.broadcast %228 : vector<1x256xi1> to vector<8x256xi1>
    %230 = vector.broadcast %cst_55 : f32 to vector<8x256xf32>
    %231 = arith.select %229, %227, %230 : vector<8x256xi1>, vector<8x256xf32>
    %232 = arith.maximumf %223, %231 : vector<8x256xf32>
    %233 = vector.extract_strided_slice %2 {offsets = [8, 0], sizes = [1, 256], strides = [1, 1]} : vector<9x256xf32> to vector<1x256xf32>
    %cst_56 = arith.constant 5.000000e-01 : f32
    %234 = vector.broadcast %cst_56 : f32 to vector<1x256xf32>
    %235 = arith.cmpf ogt, %233, %234 : vector<1x256xf32>
    %c239_i32_57 = arith.constant 239 : i32
    %236 = tpu.dynamic_rotate %169 by %c239_i32_57 dim 1 : vector<8x256xf32>, i32 -> vector<8x256xf32>
    %cst_58 = arith.constant -1.000000e+30 : f32
    %237 = vector.shape_cast %235 : vector<1x256xi1> to vector<1x256xi1>
    %238 = vector.broadcast %237 : vector<1x256xi1> to vector<8x256xi1>
    %239 = vector.broadcast %cst_58 : f32 to vector<8x256xf32>
    %240 = arith.select %238, %236, %239 : vector<8x256xi1>, vector<8x256xf32>
    %241 = arith.maximumf %232, %240 : vector<8x256xf32>
    %cst_59 = arith.constant dense<0.000000e+00> : vector<8x64xf32>
    %242 = tpu.matmul %241, %3, %cst_59 {dimension_numbers = #tpu.dot_dimension_numbers<[1], [0], [0], [1], [0, 0, 1, 1], [], []>} : vector<8x256xf32>, vector<256x64xf32>, vector<8x64xf32> -> vector<8x64xf32>
    %cst_60 = arith.constant dense<0.000000e+00> : vector<4x64xf32>
    %243 = tpu.matmul %1, %3, %cst_60 {dimension_numbers = #tpu.dot_dimension_numbers<[1], [0], [0], [1], [0, 0, 1, 1], [], []>} : vector<4x256xf32>, vector<256x64xf32>, vector<4x64xf32> -> vector<4x64xf32>
    %c0_61 = arith.constant 0 : index
    %c0_62 = arith.constant 0 : index
    %244 = vector.load %arg12[%c0_61, %c0_62] : memref<8x4xf32, #tpu.memory_space<vmem>>, vector<8x4xf32>
    %cst_63 = arith.constant dense<0.000000e+00> : vector<8x64xf32>
    %245 = tpu.matmul %244, %243, %cst_63 {dimension_numbers = #tpu.dot_dimension_numbers<[1], [0], [0], [1], [0, 0, 1, 1], [], []>} : vector<8x4xf32>, vector<4x64xf32>, vector<8x64xf32> -> vector<8x64xf32>
    %c0_64 = arith.constant 0 : index
    %c0_65 = arith.constant 0 : index
    %246 = vector.load %arg13[%c0_64, %c0_65] : memref<8x1xf32, #tpu.memory_space<vmem>>, vector<8x1xf32>
    %247 = vector.broadcast %246 : vector<8x1xf32> to vector<8x64xf32>
    %248 = arith.mulf %245, %247 : vector<8x64xf32>
    %c0_66 = arith.constant 0 : index
    %c0_67 = arith.constant 0 : index
    %249 = vector.load %arg14[%c0_66, %c0_67] : memref<8x1xf32, #tpu.memory_space<vmem>>, vector<8x1xf32>
    %250 = vector.broadcast %249 : vector<8x1xf32> to vector<8x64xf32>
    %251 = arith.addf %248, %250 : vector<8x64xf32>
    %252 = arith.addf %242, %251 : vector<8x64xf32>
    %c0_68 = arith.constant 0 : index
    %c0_69 = arith.constant 0 : index
    %c0_70 = arith.constant 0 : index
    %253 = vector.load %arg15[%c0_68, %c0_69, %c0_70] : memref<1x8x64xf32, #tpu.memory_space<vmem>>, vector<1x8x64xf32>
    %254 = vector.shape_cast %253 : vector<1x8x64xf32> to vector<8x64xf32>
    %255 = vector.shape_cast %252 : vector<8x64xf32> to vector<1x8x64xf32>
    tpu.vector_store %arg15[%c0_68, %c0_69, %c0_70], %255 {strides = array<i32>} : memref<1x8x64xf32, #tpu.memory_space<vmem>>, vector<1x8x64xf32>,
    return
  }
  func.func @transform_0(%arg0: i32) -> (i32, i32, i32) {
    %c0_i32 = arith.constant 0 : i32
    %c0_i32_0 = arith.constant 0 : i32
    %c0_i32_1 = arith.constant 0 : i32
    return %arg0, %c0_i32, %c0_i32_0 : i32, i32, i32
  }
  func.func @transform_1(%arg0: i32) -> (i32, i32) {
    %c0_i32 = arith.constant 0 : i32
    %c0_i32_0 = arith.constant 0 : i32
    %c0_i32_1 = arith.constant 0 : i32
    return %c0_i32, %c0_i32_0 : i32, i32
  }
  func.func @transform_2(%arg0: i32) -> (i32, i32) {
    %c0_i32 = arith.constant 0 : i32
    %c0_i32_0 = arith.constant 0 : i32
    %c0_i32_1 = arith.constant 0 : i32
    return %c0_i32, %c0_i32_0 : i32, i32
  }
  func.func @transform_3(%arg0: i32) -> (i32, i32) {
    %c0_i32 = arith.constant 0 : i32
    %c0_i32_0 = arith.constant 0 : i32
    %c0_i32_1 = arith.constant 0 : i32
    return %c0_i32, %c0_i32_0 : i32, i32
  }
  func.func @transform_4(%arg0: i32) -> (i32, i32) {
    %c0_i32 = arith.constant 0 : i32
    %c0_i32_0 = arith.constant 0 : i32
    %c0_i32_1 = arith.constant 0 : i32
    return %c0_i32, %c0_i32_0 : i32, i32
  }
  func.func @transform_5(%arg0: i32) -> (i32, i32) {
    %c0_i32 = arith.constant 0 : i32
    %c0_i32_0 = arith.constant 0 : i32
    %c0_i32_1 = arith.constant 0 : i32
    return %c0_i32, %c0_i32_0 : i32, i32
  }
  func.func @transform_6(%arg0: i32) -> (i32, i32) {
    %c0_i32 = arith.constant 0 : i32
    %c0_i32_0 = arith.constant 0 : i32
    %c0_i32_1 = arith.constant 0 : i32
    return %c0_i32, %c0_i32_0 : i32, i32
  }
  func.func @transform_7(%arg0: i32) -> (i32, i32) {
    %c0_i32 = arith.constant 0 : i32
    %c0_i32_0 = arith.constant 0 : i32
    %c0_i32_1 = arith.constant 0 : i32
    return %c0_i32, %c0_i32_0 : i32, i32
  }
  func.func @transform_8(%arg0: i32) -> (i32, i32) {
    %c0_i32 = arith.constant 0 : i32
    %c0_i32_0 = arith.constant 0 : i32
    %c0_i32_1 = arith.constant 0 : i32
    return %c0_i32, %c0_i32_0 : i32, i32
  }
  func.func @transform_9(%arg0: i32) -> (i32, i32) {
    %c0_i32 = arith.constant 0 : i32
    %c0_i32_0 = arith.constant 0 : i32
    %c0_i32_1 = arith.constant 0 : i32
    return %c0_i32, %c0_i32_0 : i32, i32
  }
  func.func @transform_10(%arg0: i32) -> (i32, i32) {
    %c0_i32 = arith.constant 0 : i32
    %c0_i32_0 = arith.constant 0 : i32
    %c0_i32_1 = arith.constant 0 : i32
    return %c0_i32, %c0_i32_0 : i32, i32
  }
  func.func @transform_11(%arg0: i32) -> (i32, i32) {
    %c0_i32 = arith.constant 0 : i32
    %c0_i32_0 = arith.constant 0 : i32
    %c0_i32_1 = arith.constant 0 : i32
    return %c0_i32, %c0_i32_0 : i32, i32
  }
  func.func @transform_12(%arg0: i32) -> (i32, i32) {
    %c0_i32 = arith.constant 0 : i32
    %c0_i32_0 = arith.constant 0 : i32
    %c0_i32_1 = arith.constant 0 : i32
    return %c0_i32, %c0_i32_0 : i32, i32
  }
  func.func @transform_13(%arg0: i32) -> (i32, i32) {
    %c0_i32 = arith.constant 0 : i32
    %c0_i32_0 = arith.constant 0 : i32
    %c0_i32_1 = arith.constant 0 : i32
    return %c0_i32, %c0_i32_0 : i32, i32
  }
  func.func @transform_14(%arg0: i32) -> (i32, i32, i32) {
    %c0_i32 = arith.constant 0 : i32
    %c0_i32_0 = arith.constant 0 : i32
    %c0_i32_1 = arith.constant 0 : i32
    return %arg0, %c0_i32, %c0_i32_0 : i32, i32, i32
  }
}

</mosaic_0001>

<llo_original>
// kernel: block_forward.1
$region0: #{block_forward.1}
  #allocation0 [shape = 'u32[]', space=smem, size = 0x4, offset = 0x4, fixed_abs, tag = 'smem constant byte address 0x4 - core index']
  #allocation1 [shape = 'u32[144,128]{1,0:T(1,128)}', space=vmem, size = 0x12000, scoped, tag = 'internal scratch']
  %s0 = inlined_call_operand.vmem [shape: f32[2,4,256], index: 0, kind: input, shape index: {}]
  %s1 = inlined_call_operand.vmem [shape: f32[9,256], index: 1, kind: input, shape index: {}]
  %s2 = inlined_call_operand.vmem [shape: f32[256,64], index: 2, kind: input, shape index: {}]
  %s3 = inlined_call_operand.vmem [shape: f32[4,9], index: 3, kind: input, shape index: {}]
  %s4 = inlined_call_operand.vmem [shape: f32[8,4], index: 4, kind: input, shape index: {}]
  %s5 = inlined_call_operand.vmem [shape: f32[8,1], index: 5, kind: input, shape index: {}]
  %s6 = inlined_call_operand.vmem [shape: f32[8,1], index: 6, kind: input, shape index: {}]
  %s7 = inlined_call_operand.vmem [shape: f32[8,9], index: 7, kind: input, shape index: {}]
  %s8 = inlined_call_operand.vmem [shape: f32[8,8], index: 8, kind: input, shape index: {}]
  %s9 = inlined_call_operand.vmem [shape: f32[8,1], index: 9, kind: input, shape index: {}]
  %s10 = inlined_call_operand.vmem [shape: f32[8,1], index: 10, kind: input, shape index: {}]
  %s11 = inlined_call_operand.vmem [shape: f32[8,4], index: 11, kind: input, shape index: {}]
  %s12 = inlined_call_operand.vmem [shape: f32[8,1], index: 12, kind: input, shape index: {}]
  %s13 = inlined_call_operand.vmem [shape: f32[8,1], index: 13, kind: input, shape index: {}]
  %s14 = inlined_call_operand.vmem [shape: f32[2,8,64], index: 14, kind: output, shape index: {}]
  %s15 = sld [smem:[#allocation0]]
  $region89: #{block_forward.1} parent=0
    _
  %s17 = ssub.s32 1, %s15
  %s18 = scalar_select 0, %s17, %s15
  loop: start=0, step=1, limit=4
  $region2: #{block_forward.1} parent=0 // loop_pre_header
    _
  $region3: #{block_forward.1} parent=0 // loop_header
    %s20 = sphi 0, %s24
    %p21 = scmp.ge.s32.totalorder %s20, 4
    %s30 = sphi 0, %s32
    %s33 = sphi 0, %s30
    %s34 = sphi 0, %s33
    %s50 = sphi 0, %s34
    %s54 = sphi 0, %s54
    %s56 = sphi 0, %s54
    %s57 = sphi 0, %s56
    %s71 = sphi 0, %s57
    %s75 = sphi 0, %s75
    %s77 = sphi 0, %s75
    %s78 = sphi 0, %s77
    %s92 = sphi 0, %s78
    %s96 = sphi 0, %s96
    %s98 = sphi 0, %s96
    %s99 = sphi 0, %s98
    %s113 = sphi 0, %s99
    %s117 = sphi 0, %s117
    %s119 = sphi 0, %s117
    %s120 = sphi 0, %s119
    %s134 = sphi 0, %s120
    %s138 = sphi 0, %s138
    %s140 = sphi 0, %s138
    %s141 = sphi 0, %s140
    %s155 = sphi 0, %s141
    %s159 = sphi 0, %s159
    %s161 = sphi 0, %s159
    %s162 = sphi 0, %s161
    %s176 = sphi 0, %s162
    %s180 = sphi 0, %s180
    %s182 = sphi 0, %s180
    %s183 = sphi 0, %s182
    %s197 = sphi 0, %s183
    %s201 = sphi 0, %s201
    %s203 = sphi 0, %s201
    %s204 = sphi 0, %s203
    %s218 = sphi 0, %s204
    %s222 = sphi 0, %s222
    %s224 = sphi 0, %s222
    %s225 = sphi 0, %s224
    %s239 = sphi 0, %s225
    %s243 = sphi 0, %s243
    %s245 = sphi 0, %s243
    %s246 = sphi 0, %s245
    %s260 = sphi 0, %s246
    %s264 = sphi 0, %s264
    %s266 = sphi 0, %s264
    %s267 = sphi 0, %s266
    %s281 = sphi 0, %s267
    %s285 = sphi 0, %s285
    %s287 = sphi 0, %s285
    %s288 = sphi 0, %s287
    %s302 = sphi 0, %s288
    %s306 = sphi 0, %s306
    %s308 = sphi 0, %s306
    %s309 = sphi 0, %s308
    %s323 = sphi 0, %s309
    %s329 = sphi 0, %s331
    %s332 = sphi 0, %s329
    %s333 = sphi 0, %s332
    %s349 = sphi 0, %s333
  $region4: #{block_forward.1} parent=0 // loop_header_branch
    %23 = sbr.rel (%p21) target = $region8
  $region5: #{block_forward.1} parent=0 // loop_body
    %s25 = ssub.s32 %s20, 1
    %s26 = ssub.s32 %s20, 2
    %s27 = sadd.s32 %s20, 1
    %s28 = ssub.s32 %s20, %s27
    %p29 = scmp.eq.s32.totalorder %s28, 0
    %s31 = sadd.s32 %s30, 1
    %s32 = scalar_select %p29, %s30, %s31
    %p35 = pneg %p29
    %p36 = scmp.eq.s32.totalorder %s20, 1
    %p37 = por %p35, %p36
    %p38 = scmp.ne.s32.totalorder %s30, %s33
    %p39 = scmp.eq.s32.totalorder %s20, 0
    %p40 = por %p38, %p39
    %p41 = scmp.ne.s32.totalorder %s30, %s33
    %p42 = scmp.eq.s32.totalorder %s25, 1
    %p43 = por %p41, %p42
    %p44 = scmp.ne.s32.totalorder %s33, %s34
    %p45 = scmp.eq.s32.totalorder %s25, 0
    %p46 = por %p44, %p45
    %p47 = scmp.ne.s32.totalorder %s33, %s34
    %p48 = scmp.eq.s32.totalorder %s26, 1
    %p49 = por %p47, %p48
    %p51 = scmp.ne.s32.totalorder %s34, %s50
    %p52 = scmp.eq.s32.totalorder %s26, 0
    %p53 = por %p51, %p52
    %s55 = sadd.s32 %s54, 1
    %p58 = scmp.eq.s32.totalorder %s20, 1
    %p59 = scmp.ne.s32.totalorder %s54, %s56
    %p60 = scmp.eq.s32.totalorder %s20, 0
    %p61 = por %p59, %p60
    %p62 = scmp.ne.s32.totalorder %s54, %s56
    %p63 = scmp.eq.s32.totalorder %s25, 1
    %p64 = por %p62, %p63
    %p65 = scmp.ne.s32.totalorder %s56, %s57
    %p66 = scmp.eq.s32.totalorder %s25, 0
    %p67 = por %p65, %p66
    %p68 = scmp.ne.s32.totalorder %s56, %s57
    %p69 = scmp.eq.s32.totalorder %s26, 1
    %p70 = por %p68, %p69
    %p72 = scmp.ne.s32.totalorder %s57, %s71
    %p73 = scmp.eq.s32.totalorder %s26, 0
    %p74 = por %p72, %p73
    %s76 = sadd.s32 %s75, 1
    %p79 = scmp.eq.s32.totalorder %s20, 1
    %p80 = scmp.ne.s32.totalorder %s75, %s77
    %p81 = scmp.eq.s32.totalorder %s20, 0
    %p82 = por %p80, %p81
    %p83 = scmp.ne.s32.totalorder %s75, %s77
    %p84 = scmp.eq.s32.totalorder %s25, 1
    %p85 = por %p83, %p84
    %p86 = scmp.ne.s32.totalorder %s77, %s78
    %p87 = scmp.eq.s32.totalorder %s25, 0
    %p88 = por %p86, %p87
    %p89 = scmp.ne.s32.totalorder %s77, %s78
    %p90 = scmp.eq.s32.totalorder %s26, 1
    %p91 = por %p89, %p90
    %p93 = scmp.ne.s32.totalorder %s78, %s92
    %p94 = scmp.eq.s32.totalorder %s26, 0
    %p95 = por %p93, %p94
    %s97 = sadd.s32 %s96, 1
    %p100 = scmp.eq.s32.totalorder %s20, 1
    %p101 = scmp.ne.s32.totalorder %s96, %s98
    %p102 = scmp.eq.s32.totalorder %s20, 0
    %p103 = por %p101, %p102
    %p104 = scmp.ne.s32.totalorder %s96, %s98
    %p105 = scmp.eq.s32.totalorder %s25, 1
    %p106 = por %p104, %p105
    %p107 = scmp.ne.s32.totalorder %s98, %s99
    %p108 = scmp.eq.s32.totalorder %s25, 0
    %p109 = por %p107, %p108
    %p110 = scmp.ne.s32.totalorder %s98, %s99
    %p111 = scmp.eq.s32.totalorder %s26, 1
    %p112 = por %p110, %p111
    %p114 = scmp.ne.s32.totalorder %s99, %s113
    %p115 = scmp.eq.s32.totalorder %s26, 0
    %p116 = por %p114, %p115
    %s118 = sadd.s32 %s117, 1
    %p121 = scmp.eq.s32.totalorder %s20, 1
    %p122 = scmp.ne.s32.totalorder %s117, %s119
    %p123 = scmp.eq.s32.totalorder %s20, 0
    %p124 = por %p122, %p123
    %p125 = scmp.ne.s32.totalorder %s117, %s119
    %p126 = scmp.eq.s32.totalorder %s25, 1
    %p127 = por %p125, %p126
    %p128 = scmp.ne.s32.totalorder %s119, %s120
    %p129 = scmp.eq.s32.totalorder %s25, 0
    %p130 = por %p128, %p129
    %p131 = scmp.ne.s32.totalorder %s119, %s120
    %p132 = scmp.eq.s32.totalorder %s26, 1
    %p133 = por %p131, %p132
    %p135 = scmp.ne.s32.totalorder %s120, %s134
    %p136 = scmp.eq.s32.totalorder %s26, 0
    %p137 = por %p135, %p136
    %s139 = sadd.s32 %s138, 1
    %p142 = scmp.eq.s32.totalorder %s20, 1
    %p143 = scmp.ne.s32.totalorder %s138, %s140
    %p144 = scmp.eq.s32.totalorder %s20, 0
    %p145 = por %p143, %p144
    %p146 = scmp.ne.s32.totalorder %s138, %s140
    %p147 = scmp.eq.s32.totalorder %s25, 1
    %p148 = por %p146, %p147
    %p149 = scmp.ne.s32.totalorder %s140, %s141
    %p150 = scmp.eq.s32.totalorder %s25, 0
    %p151 = por %p149, %p150
    %p152 = scmp.ne.s32.totalorder %s140, %s141
    %p153 = scmp.eq.s32.totalorder %s26, 1
    %p154 = por %p152, %p153
    %p156 = scmp.ne.s32.totalorder %s141, %s155
    %p157 = scmp.eq.s32.totalorder %s26, 0
    %p158 = por %p156, %p157
    %s160 = sadd.s32 %s159, 1
    %p163 = scmp.eq.s32.totalorder %s20, 1
    %p164 = scmp.ne.s32.totalorder %s159, %s161
    %p165 = scmp.eq.s32.totalorder %s20, 0
    %p166 = por %p164, %p165
    %p167 = scmp.ne.s32.totalorder %s159, %s161
    %p168 = scmp.eq.s32.totalorder %s25, 1
    %p169 = por %p167, %p168
    %p170 = scmp.ne.s32.totalorder %s161, %s162
    %p171 = scmp.eq.s32.totalorder %s25, 0
    %p172 = por %p170, %p171
    %p173 = scmp.ne.s32.totalorder %s161, %s162
    %p174 = scmp.eq.s32.totalorder %s26, 1
    %p175 = por %p173, %p174
    %p177 = scmp.ne.s32.totalorder %s162, %s176
    %p178 = scmp.eq.s32.totalorder %s26, 0
    %p179 = por %p177, %p178
    %s181 = sadd.s32 %s180, 1
    %p184 = scmp.eq.s32.totalorder %s20, 1
    %p185 = scmp.ne.s32.totalorder %s180, %s182
    %p186 = scmp.eq.s32.totalorder %s20, 0
    %p187 = por %p185, %p186
    %p188 = scmp.ne.s32.totalorder %s180, %s182
    %p189 = scmp.eq.s32.totalorder %s25, 1
    %p190 = por %p188, %p189
    %p191 = scmp.ne.s32.totalorder %s182, %s183
    %p192 = scmp.eq.s32.totalorder %s25, 0
    %p193 = por %p191, %p192
    %p194 = scmp.ne.s32.totalorder %s182, %s183
    %p195 = scmp.eq.s32.totalorder %s26, 1
    %p196 = por %p194, %p195
    %p198 = scmp.ne.s32.totalorder %s183, %s197
    %p199 = scmp.eq.s32.totalorder %s26, 0
    %p200 = por %p198, %p199
    %s202 = sadd.s32 %s201, 1
    %p205 = scmp.eq.s32.totalorder %s20, 1
    %p206 = scmp.ne.s32.totalorder %s201, %s203
    %p207 = scmp.eq.s32.totalorder %s20, 0
    %p208 = por %p206, %p207
    %p209 = scmp.ne.s32.totalorder %s201, %s203
    %p210 = scmp.eq.s32.totalorder %s25, 1
    %p211 = por %p209, %p210
    %p212 = scmp.ne.s32.totalorder %s203, %s204
    %p213 = scmp.eq.s32.totalorder %s25, 0
    %p214 = por %p212, %p213
    %p215 = scmp.ne.s32.totalorder %s203, %s204
    %p216 = scmp.eq.s32.totalorder %s26, 1
    %p217 = por %p215, %p216
    %p219 = scmp.ne.s32.totalorder %s204, %s218
    %p220 = scmp.eq.s32.totalorder %s26, 0
    %p221 = por %p219, %p220
    %s223 = sadd.s32 %s222, 1
    %p226 = scmp.eq.s32.totalorder %s20, 1
    %p227 = scmp.ne.s32.totalorder %s222, %s224
    %p228 = scmp.eq.s32.totalorder %s20, 0
    %p229 = por %p227, %p228
    %p230 = scmp.ne.s32.totalorder %s222, %s224
    %p231 = scmp.eq.s32.totalorder %s25, 1
    %p232 = por %p230, %p231
    %p233 = scmp.ne.s32.totalorder %s224, %s225
    %p234 = scmp.eq.s32.totalorder %s25, 0
    %p235 = por %p233, %p234
    %p236 = scmp.ne.s32.totalorder %s224, %s225
    %p237 = scmp.eq.s32.totalorder %s26, 1
    %p238 = por %p236, %p237
    %p240 = scmp.ne.s32.totalorder %s225, %s239
    %p241 = scmp.eq.s32.totalorder %s26, 0
    %p242 = por %p240, %p241
    %s244 = sadd.s32 %s243, 1
    %p247 = scmp.eq.s32.totalorder %s20, 1
    %p248 = scmp.ne.s32.totalorder %s243, %s245
    %p249 = scmp.eq.s32.totalorder %s20, 0
    %p250 = por %p248, %p249
    %p251 = scmp.ne.s32.totalorder %s243, %s245
    %p252 = scmp.eq.s32.totalorder %s25, 1
    %p253 = por %p251, %p252
    %p254 = scmp.ne.s32.totalorder %s245, %s246
    %p255 = scmp.eq.s32.totalorder %s25, 0
    %p256 = por %p254, %p255
    %p257 = scmp.ne.s32.totalorder %s245, %s246
    %p258 = scmp.eq.s32.totalorder %s26, 1
    %p259 = por %p257, %p258
    %p261 = scmp.ne.s32.totalorder %s246, %s260
    %p262 = scmp.eq.s32.totalorder %s26, 0
    %p263 = por %p261, %p262
    %s265 = sadd.s32 %s264, 1
    %p268 = scmp.eq.s32.totalorder %s20, 1
    %p269 = scmp.ne.s32.totalorder %s264, %s266
    %p270 = scmp.eq.s32.totalorder %s20, 0
    %p271 = por %p269, %p270
    %p272 = scmp.ne.s32.totalorder %s264, %s266
    %p273 = scmp.eq.s32.totalorder %s25, 1
    %p274 = por %p272, %p273
    %p275 = scmp.ne.s32.totalorder %s266, %s267
    %p276 = scmp.eq.s32.totalorder %s25, 0
    %p277 = por %p275, %p276
    %p278 = scmp.ne.s32.totalorder %s266, %s267
    %p279 = scmp.eq.s32.totalorder %s26, 1
    %p280 = por %p278, %p279
    %p282 = scmp.ne.s32.totalorder %s267, %s281
    %p283 = scmp.eq.s32.totalorder %s26, 0
    %p284 = por %p282, %p283
    %s286 = sadd.s32 %s285, 1
    %p289 = scmp.eq.s32.totalorder %s20, 1
    %p290 = scmp.ne.s32.totalorder %s285, %s287
    %p291 = scmp.eq.s32.totalorder %s20, 0
    %p292 = por %p290, %p291
    %p293 = scmp.ne.s32.totalorder %s285, %s287
    %p294 = scmp.eq.s32.totalorder %s25, 1
    %p295 = por %p293, %p294
    %p296 = scmp.ne.s32.totalorder %s287, %s288
    %p297 = scmp.eq.s32.totalorder %s25, 0
    %p298 = por %p296, %p297
    %p299 = scmp.ne.s32.totalorder %s287, %s288
    %p300 = scmp.eq.s32.totalorder %s26, 1
    %p301 = por %p299, %p300
    %p303 = scmp.ne.s32.totalorder %s288, %s302
    %p304 = scmp.eq.s32.totalorder %s26, 0
    %p305 = por %p303, %p304
    %s307 = sadd.s32 %s306, 1
    %p310 = scmp.eq.s32.totalorder %s20, 1
    %p311 = scmp.ne.s32.totalorder %s306, %s308
    %p312 = scmp.eq.s32.totalorder %s20, 0
    %p313 = por %p311, %p312
    %p314 = scmp.ne.s32.totalorder %s306, %s308
    %p315 = scmp.eq.s32.totalorder %s25, 1
    %p316 = por %p314, %p315
    %p317 = scmp.ne.s32.totalorder %s308, %s309
    %p318 = scmp.eq.s32.totalorder %s25, 0
    %p319 = por %p317, %p318
    %p320 = scmp.ne.s32.totalorder %s308, %s309
    %p321 = scmp.eq.s32.totalorder %s26, 1
    %p322 = por %p320, %p321
    %p324 = scmp.ne.s32.totalorder %s309, %s323
    %p325 = scmp.eq.s32.totalorder %s26, 0
    %p326 = por %p324, %p325
    %s327 = ssub.s32 %s20, %s27
    %p328 = scmp.eq.s32.totalorder %s327, 0
    %s330 = sadd.s32 %s329, 1
    %s331 = scalar_select %p328, %s329, %s330
    %p334 = pneg %p328
    %p335 = scmp.eq.s32.totalorder %s20, 1
    %p336 = por %p334, %p335
    %p337 = scmp.ne.s32.totalorder %s329, %s332
    %p338 = scmp.eq.s32.totalorder %s20, 0
    %p339 = por %p337, %p338
    %p340 = scmp.ne.s32.totalorder %s329, %s332
    %p341 = scmp.eq.s32.totalorder %s25, 1
    %p342 = por %p340, %p341
    %p343 = scmp.ne.s32.totalorder %s332, %s333
    %p344 = scmp.eq.s32.totalorder %s25, 0
    %p345 = por %p343, %p344
    %p346 = scmp.ne.s32.totalorder %s332, %s333
    %p347 = scmp.eq.s32.totalorder %s26, 1
    %p348 = por %p346, %p347
    %p350 = scmp.ne.s32.totalorder %s333, %s349
    %p351 = scmp.eq.s32.totalorder %s26, 0
    %p352 = por %p350, %p351
    %p353 = scmp.le.s32.totalorder 1, %s20
    %p354 = scmp.lt.s32.totalorder %s20, 3
    %p355 = pnand %p353, %p354
    %p356 = pneg %p355
    // Predicated region
    $region9: #{block_forward.1} parent=5 // pred_check
      _
    $region10: #{block_forward.1} parent=5 // pred_check_branch
      %358 = sbr.rel (%p355) target = $region12
    $region11: #{block_forward.1} parent=5 // pred_region
      %s359 = ssub.s32 %s20, 1
      // Predicated region
      $region13: #{block_forward.1} parent=11 // pred_check
        %p360 = pneg %p67
      $region14: #{block_forward.1} parent=11 // pred_check_branch
        %362 = sbr.rel (%p360) target = $region16
      $region15: #{block_forward.1} parent=11 // pred_region
        _
      $region16: #{block_forward.1} parent=11 // pred_fallthru
        _
      // Predicated region
      $region17: #{block_forward.1} parent=11 // pred_check
        %p363 = pneg %p88
      $region18: #{block_forward.1} parent=11 // pred_check_branch
        %365 = sbr.rel (%p363) target = $region20
      $region19: #{block_forward.1} parent=11 // pred_region
        _
      $region20: #{block_forward.1} parent=11 // pred_fallthru
        _
      // Predicated region
      $region21: #{block_forward.1} parent=11 // pred_check
        %p366 = pneg %p109
      $region22: #{block_forward.1} parent=11 // pred_check_branch
        %368 = sbr.rel (%p366) target = $region24
      $region23: #{block_forward.1} parent=11 // pred_region
        _
      $region24: #{block_forward.1} parent=11 // pred_fallthru
        _
      // Predicated region
      $region25: #{block_forward.1} parent=11 // pred_check
        %p369 = pneg %p130
      $region26: #{block_forward.1} parent=11 // pred_check_branch
        %371 = sbr.rel (%p369) target = $region28
      $region27: #{block_forward.1} parent=11 // pred_region
        _
      $region28: #{block_forward.1} parent=11 // pred_fallthru
        _
      // Predicated region
      $region29: #{block_forward.1} parent=11 // pred_check
        %p372 = pneg %p151
      $region30: #{block_forward.1} parent=11 // pred_check_branch
        %374 = sbr.rel (%p372) target = $region32
      $region31: #{block_forward.1} parent=11 // pred_region
        _
      $region32: #{block_forward.1} parent=11 // pred_fallthru
        _
      // Predicated region
      $region33: #{block_forward.1} parent=11 // pred_check
        %p375 = pneg %p172
      $region34: #{block_forward.1} parent=11 // pred_check_branch
        %377 = sbr.rel (%p375) target = $region36
      $region35: #{block_forward.1} parent=11 // pred_region
        _
      $region36: #{block_forward.1} parent=11 // pred_fallthru
        _
      // Predicated region
      $region37: #{block_forward.1} parent=11 // pred_check
        %p378 = pneg %p193
      $region38: #{block_forward.1} parent=11 // pred_check_branch
        %380 = sbr.rel (%p378) target = $region40
      $region39: #{block_forward.1} parent=11 // pred_region
        _
      $region40: #{block_forward.1} parent=11 // pred_fallthru
        _
      // Predicated region
      $region41: #{block_forward.1} parent=11 // pred_check
        %p381 = pneg %p214
      $region42: #{block_forward.1} parent=11 // pred_check_branch
        %383 = sbr.rel (%p381) target = $region44
      $region43: #{block_forward.1} parent=11 // pred_region
        _
      $region44: #{block_forward.1} parent=11 // pred_fallthru
        _
      // Predicated region
      $region45: #{block_forward.1} parent=11 // pred_check
        %p384 = pneg %p235
      $region46: #{block_forward.1} parent=11 // pred_check_branch
        %386 = sbr.rel (%p384) target = $region48
      $region47: #{block_forward.1} parent=11 // pred_region
        _
      $region48: #{block_forward.1} parent=11 // pred_fallthru
        _
      // Predicated region
      $region49: #{block_forward.1} parent=11 // pred_check
        %p387 = pneg %p256
      $region50: #{block_forward.1} parent=11 // pred_check_branch
        %389 = sbr.rel (%p387) target = $region52
      $region51: #{block_forward.1} parent=11 // pred_region
        _
      $region52: #{block_forward.1} parent=11 // pred_fallthru
        _
      // Predicated region
      $region53: #{block_forward.1} parent=11 // pred_check
        %p390 = pneg %p277
      $region54: #{block_forward.1} parent=11 // pred_check_branch
        %392 = sbr.rel (%p390) target = $region56
      $region55: #{block_forward.1} parent=11 // pred_region
        _
      $region56: #{block_forward.1} parent=11 // pred_fallthru
        _
      // Predicated region
      $region57: #{block_forward.1} parent=11 // pred_check
        %p393 = pneg %p298
      $region58: #{block_forward.1} parent=11 // pred_check_branch
        %395 = sbr.rel (%p393) target = $region60
      $region59: #{block_forward.1} parent=11 // pred_region
        _
      $region60: #{block_forward.1} parent=11 // pred_fallthru
        _
      // Predicated region
      $region61: #{block_forward.1} parent=11 // pred_check
        %p396 = pneg %p319
      $region62: #{block_forward.1} parent=11 // pred_check_branch
        %398 = sbr.rel (%p396) target = $region64
      $region63: #{block_forward.1} parent=11 // pred_region
        _
      $region64: #{block_forward.1} parent=11 // pred_fallthru
        _
    $region12: #{block_forward.1} parent=5 // pred_fallthru
      _
    %p399 = scmp.lt.s32.totalorder %s20, 2
    // Predicated region
    $region65: #{block_forward.1} parent=5 // pred_check
      %p400 = pneg %p399
    $region66: #{block_forward.1} parent=5 // pred_check_branch
      %402 = sbr.rel (%p400) target = $region68
    $region67: #{block_forward.1} parent=5 // pred_region
      // Predicated region
      $region69: #{block_forward.1} parent=67 // pred_check
        %p403 = pneg %p40
      $region70: #{block_forward.1} parent=67 // pred_check_branch
        %405 = sbr.rel (%p403) target = $region72
      $region71: #{block_forward.1} parent=67 // pred_region
        %p406 = scmp.lt.s32.totalorder %s20, 1
        %s407 = scalar_select %p406, %s20, 1
        %s408 = smul.addr %s407, 2
        %s409 = smul.addr %s408, 4
        %s410 = scalar_lea.vmem %s0, %s409
      $region72: #{block_forward.1} parent=67 // pred_fallthru
        _
    $region68: #{block_forward.1} parent=5 // pred_fallthru
      _
    %p411 = scmp.le.s32.totalorder 1, %s20
    %p412 = scmp.lt.s32.totalorder %s20, 3
    %p413 = pnand %p411, %p412
    %p414 = pneg %p413
    // Predicated region
    $region73: #{block_forward.1} parent=5 // pred_check
      _
    $region74: #{block_forward.1} parent=5 // pred_check_branch
      %416 = sbr.rel (%p413) target = $region76
    $region75: #{block_forward.1} parent=5 // pred_region
      %s417 = ssub.s32 %s20, 1
      %p418 = scmp.lt.s32.totalorder %s25, 1
      %s419 = scalar_select %p418, %s25, 1
      %s420 = smul.addr %s419, 2
      %s421 = smul.addr %s420, 4
      %s422 = scalar_lea.vmem %s0, %s421
      %p423 = pneg %p46
      %p424 = pneg %p43
      %p425 = pneg %p67
      %p426 = pneg %p64
      %p427 = pneg %p88
      %p428 = pneg %p85
      %p429 = pneg %p109
      %p430 = pneg %p106
      %p431 = pneg %p130
      %p432 = pneg %p127
      %p433 = pneg %p151
      %p434 = pneg %p148
      %p435 = pneg %p172
      %p436 = pneg %p169
      %p437 = pneg %p193
      %p438 = pneg %p190
      %p439 = pneg %p214
      %p440 = pneg %p211
      %p441 = pneg %p235
      %p442 = pneg %p232
      %p443 = pneg %p256
      %p444 = pneg %p253
      %p445 = pneg %p277
      %p446 = pneg %p274
      %p447 = pneg %p298
      %p448 = pneg %p295
      %p449 = pneg %p319
      %p450 = pneg %p316
      %p451 = pneg %p345
      %p452 = pneg %p342
      %p453 = scmp.lt.s32.totalorder %s25, 1
      %s454 = scalar_select %p453, %s25, 1
      %s455 = smul.addr %s454, 8
      %s456 = scalar_lea.vmem %s14, %s455
      %p457 = scmp.lt.s32.totalorder %s25, 1
      %s458 = scalar_select %p457, %s25, 1
      %s459 = smul.addr %s458, 2
      %s460 = smul.addr %s459, 4
      %s461 = scalar_lea.vmem %s0, %s460
      %p462 = scmp.lt.s32.totalorder %s25, 1
      %s463 = scalar_select %p462, %s25, 1
      %s464 = smul.addr %s463, 8
      %s465 = scalar_lea.vmem %s14, %s464
      %v466 = vld [vmem:[%s461] sm:$0xff]
      %v467 = vld [vmem:[%s1] sm:$0xff]
      %v468 = vld [vmem:[%s1 + $0x8] sm:$0xff]
      %v469 = vld [vmem:[%s1 + $0x10] sm:$0x1]
      %v470 = vld [vmem:[%s1 + $0x18] sm:$0x1]
      %v471 = vld [vmem:[%s2] sm:$0xff]
      %v472 = vld [vmem:[%s2 + $0x8] sm:$0xff]
      %v473 = vld [vmem:[%s2 + $0x10] sm:$0xff]
      %v474 = vld [vmem:[%s2 + $0x18] sm:$0xff]
      %v475 = vld [vmem:[%s2 + $0x20] sm:$0xff]
      %v476 = vld [vmem:[%s2 + $0x28] sm:$0xff]
      %v477 = vld [vmem:[%s2 + $0x30] sm:$0xff]
      %v478 = vld [vmem:[%s2 + $0x38] sm:$0xff]
      %v479 = vld [vmem:[%s2 + $0x40] sm:$0xff]
      %v480 = vld [vmem:[%s2 + $0x48] sm:$0xff]
      %v481 = vld [vmem:[%s2 + $0x50] sm:$0xff]
      %v482 = vld [vmem:[%s2 + $0x58] sm:$0xff]
      %v483 = vld [vmem:[%s2 + $0x60] sm:$0xff]
      %v484 = vld [vmem:[%s2 + $0x68] sm:$0xff]
      %v485 = vld [vmem:[%s2 + $0x70] sm:$0xff]
      %v486 = vld [vmem:[%s2 + $0x78] sm:$0xff]
      %v487 = vld [vmem:[%s2 + $0x80] sm:$0xff]
      %v488 = vld [vmem:[%s2 + $0x88] sm:$0xff]
      %v489 = vld [vmem:[%s2 + $0x90] sm:$0xff]
      %v490 = vld [vmem:[%s2 + $0x98] sm:$0xff]
      %v491 = vld [vmem:[%s2 + $0xa0] sm:$0xff]
      %v492 = vld [vmem:[%s2 + $0xa8] sm:$0xff]
      %v493 = vld [vmem:[%s2 + $0xb0] sm:$0xff]
      %v494 = vld [vmem:[%s2 + $0xb8] sm:$0xff]
      %v495 = vld [vmem:[%s2 + $0xc0] sm:$0xff]
      %v496 = vld [vmem:[%s2 + $0xc8] sm:$0xff]
      %v497 = vld [vmem:[%s2 + $0xd0] sm:$0xff]
      %v498 = vld [vmem:[%s2 + $0xd8] sm:$0xff]
      %v499 = vld [vmem:[%s2 + $0xe0] sm:$0xff]
      %v500 = vld [vmem:[%s2 + $0xe8] sm:$0xff]
      %v501 = vld [vmem:[%s2 + $0xf0] sm:$0xff]
      %v502 = vld [vmem:[%s2 + $0xf8] sm:$0xff]
      %v503 = vmax.f32 %v466, 0.0
      %v504 = vld [vmem:[%s3] sm:$0xf]
      %v505 = vld [vmem:[%s4] sm:$0xff]
      %v506 = vld [vmem:[%s5] sm:$0xff]
      %v507 = vld [vmem:[%s6] sm:$0xff]
      %v509 = vcombine.high %v503, %v503
      %511 = vrot.lane.b32.xlu0 %v503, 17
      %v512 = vpop.permute.xlu0 %511
      %513 = vrot.lane.b32.xlu0 %v509, 17
      %v514 = vpop.permute.xlu0 %513
      %v515 = vlaneseq
      %v516 = vand.u32 %v515, 127
      %vm517 = vcmp.lt.s32.totalorder %v516, 17
      %v518 = vsel %vm517, %v512, %v514
      %v519 = vsel %vm517, %v514, %v512
      %v520 = vlaneseq
      %v521 = vshrl.u32 %v520, 7
      %v522 = vsub.s32 0, %v521
      %v523 = vrot.slane %v467, %v522
      %v524 = vlaneseq
      %v525 = vshrl.u32 %v524, 7
      %v526 = vsub.s32 0, %v525
      %v527 = vrot.slane %v468, %v526
      %v528 = vmul.f32 %v519, %v523
      %v529 = vmul.f32 %v518, %v527
      %531 = vset.pattern.permute.xlu0 0
      %532 = vperm.xlu0 %531, %v504
      %v533 = vpop.permute.xlu0 %532
      %v535 = vmul.f32 %v528, %v533
      %v536 = vmul.f32 %v529, %v533
      %v537 = vadd.f32 %v535, 0.0
      %v538 = vadd.f32 %v536, 0.0
      %539 = vrot.lane.b32.xlu0 %v503, 16
      %v540 = vpop.permute.xlu0 %539
      %541 = vrot.lane.b32.xlu0 %v509, 16
      %v542 = vpop.permute.xlu0 %541
      %vm543 = vcmp.lt.s32.totalorder %v516, 16
      %v544 = vsel %vm543, %v540, %v542
      %v545 = vsel %vm543, %v542, %v540
      %v546 = vlaneseq
      %v547 = vshrl.u32 %v546, 7
      %v548 = vsub.s32 1, %v547
      %v549 = vrot.slane %v467, %v548
      %v550 = vlaneseq
      %v551 = vshrl.u32 %v550, 7
      %v552 = vsub.s32 1, %v551
      %v553 = vrot.slane %v468, %v552
      %v554 = vmul.f32 %v545, %v549
      %v555 = vmul.f32 %v544, %v553
      %556 = vset.pattern.permute.xlu0 1
      %557 = vperm.xlu0 %556, %v504
      %v558 = vpop.permute.xlu0 %557
      %v560 = vmul.f32 %v554, %v558
      %v561 = vmul.f32 %v555, %v558
      %v562 = vadd.f32 %v537, %v560
      %v563 = vadd.f32 %v538, %v561
      %564 = vrot.lane.b32.xlu0 %v503, 15
      %v565 = vpop.permute.xlu0 %564
      %566 = vrot.lane.b32.xlu0 %v509, 15
      %v567 = vpop.permute.xlu0 %566
      %vm568 = vcmp.lt.s32.totalorder %v516, 15
      %v569 = vsel %vm568, %v565, %v567
      %v570 = vsel %vm568, %v567, %v565
      %v571 = vlaneseq
      %v572 = vshrl.u32 %v571, 7
      %v573 = vsub.s32 2, %v572
      %v574 = vrot.slane %v467, %v573
      %v575 = vlaneseq
      %v576 = vshrl.u32 %v575, 7
      %v577 = vsub.s32 2, %v576
      %v578 = vrot.slane %v468, %v577
      %v579 = vmul.f32 %v570, %v574
      %v580 = vmul.f32 %v569, %v578
      %581 = vset.pattern.permute.xlu0 2
      %582 = vperm.xlu0 %581, %v504
      %v583 = vpop.permute.xlu0 %582
      %v585 = vmul.f32 %v579, %v583
      %v586 = vmul.f32 %v580, %v583
      %v587 = vadd.f32 %v562, %v585
      %v588 = vadd.f32 %v563, %v586
      %589 = vrot.lane.b32.xlu0 %v503, 1
      %v590 = vpop.permute.xlu0 %589
      %591 = vrot.lane.b32.xlu0 %v509, 1
      %v592 = vpop.permute.xlu0 %591
      %vm593 = vcmp.lt.s32.totalorder %v516, 1
      %v594 = vsel %vm593, %v590, %v592
      %v595 = vsel %vm593, %v592, %v590
      %v596 = vlaneseq
      %v597 = vshrl.u32 %v596, 7
      %v598 = vsub.s32 3, %v597
      %v599 = vrot.slane %v467, %v598
      %v600 = vlaneseq
      %v601 = vshrl.u32 %v600, 7
      %v602 = vsub.s32 3, %v601
      %v603 = vrot.slane %v468, %v602
      %v604 = vmul.f32 %v595, %v599
      %v605 = vmul.f32 %v594, %v603
      %606 = vset.pattern.permute.xlu0 3
      %607 = vperm.xlu0 %606, %v504
      %v608 = vpop.permute.xlu0 %607
      %v610 = vmul.f32 %v604, %v608
      %v611 = vmul.f32 %v605, %v608
      %v612 = vadd.f32 %v587, %v610
      %v613 = vadd.f32 %v588, %v611
      %v614 = vlaneseq
      %v615 = vshrl.u32 %v614, 7
      %v616 = vsub.s32 4, %v615
      %v617 = vrot.slane %v467, %v616
      %v618 = vlaneseq
      %v619 = vshrl.u32 %v618, 7
      %v620 = vsub.s32 4, %v619
      %v621 = vrot.slane %v468, %v620
      %v624 = vcombine.low %v617, %v621
      %v626 = vmul.f32 %v503, %v624
      %627 = vset.pattern.permute.xlu0 4
      %628 = vperm.xlu0 %627, %v504
      %v629 = vpop.permute.xlu0 %628
      %v631 = vunpack.c.l.s4 839922192
      %v632 = vunpack.c.0.s8 %v631
      %v633 = vlaneseq
      %v634 = vshrl.u32 %v633, 7
      %v635 = vsub.s32 %v632, %v634
      %v636 = vrot.slane %v629, %v635
      %v638 = vmul.f32 %v626, %v636
      %v640 = vcombine.high %v638, %v638
      %v642 = vadd.f32 %v612, %v638
      %v643 = vadd.f32 %v613, %v640
      %644 = vrot.lane.b32.xlu0 %v503, 127
      %v645 = vpop.permute.xlu0 %644
      %646 = vrot.lane.b32.xlu0 %v509, 127
      %v647 = vpop.permute.xlu0 %646
      %vm648 = vcmp.lt.s32.totalorder %v516, 127
      %v649 = vsel %vm648, %v645, %v647
      %v650 = vsel %vm648, %v647, %v645
      %v651 = vlaneseq
      %v652 = vshrl.u32 %v651, 7
      %v653 = vsub.s32 5, %v652
      %v654 = vrot.slane %v467, %v653
      %v655 = vlaneseq
      %v656 = vshrl.u32 %v655, 7
      %v657 = vsub.s32 5, %v656
      %v658 = vrot.slane %v468, %v657
      %v659 = vmul.f32 %v649, %v654
      %v660 = vmul.f32 %v650, %v658
      %661 = vset.pattern.permute.xlu0 5
      %662 = vperm.xlu0 %661, %v504
      %v663 = vpop.permute.xlu0 %662
      %v665 = vmul.f32 %v659, %v663
      %v666 = vmul.f32 %v660, %v663
      %v667 = vadd.f32 %v642, %v665
      %v668 = vadd.f32 %v643, %v666
      %669 = vrot.lane.b32.xlu0 %v503, 113
      %v670 = vpop.permute.xlu0 %669
      %671 = vrot.lane.b32.xlu0 %v509, 113
      %v672 = vpop.permute.xlu0 %671
      %vm673 = vcmp.lt.s32.totalorder %v516, 113
      %v674 = vsel %vm673, %v670, %v672
      %v675 = vsel %vm673, %v672, %v670
      %v676 = vlaneseq
      %v677 = vshrl.u32 %v676, 7
      %v678 = vsub.s32 6, %v677
      %v679 = vrot.slane %v467, %v678
      %v680 = vlaneseq
      %v681 = vshrl.u32 %v680, 7
      %v682 = vsub.s32 6, %v681
      %v683 = vrot.slane %v468, %v682
      %v684 = vmul.f32 %v674, %v679
      %v685 = vmul.f32 %v675, %v683
      %686 = vset.pattern.permute.xlu0 6
      %687 = vperm.xlu0 %686, %v504
      %v688 = vpop.permute.xlu0 %687
      %v690 = vmul.f32 %v684, %v688
      %v691 = vmul.f32 %v685, %v688
      %v692 = vadd.f32 %v667, %v690
      %v693 = vadd.f32 %v668, %v691
      %694 = vrot.lane.b32.xlu0 %v503, 112
      %v695 = vpop.permute.xlu0 %694
      %696 = vrot.lane.b32.xlu0 %v509, 112
      %v697 = vpop.permute.xlu0 %696
      %vm698 = vcmp.lt.s32.totalorder %v516, 112
      %v699 = vsel %vm698, %v695, %v697
      %v700 = vsel %vm698, %v697, %v695
      %v701 = vlaneseq
      %v702 = vshrl.u32 %v701, 7
      %v703 = vsub.s32 7, %v702
      %v704 = vrot.slane %v467, %v703
      %v705 = vlaneseq
      %v706 = vshrl.u32 %v705, 7
      %v707 = vsub.s32 7, %v706
      %v708 = vrot.slane %v468, %v707
      %v709 = vmul.f32 %v699, %v704
      %v710 = vmul.f32 %v700, %v708
      %711 = vset.pattern.permute.xlu0 7
      %712 = vperm.xlu0 %711, %v504
      %v713 = vpop.permute.xlu0 %712
      %v715 = vmul.f32 %v709, %v713
      %v716 = vmul.f32 %v710, %v713
      %v717 = vadd.f32 %v692, %v715
      %v718 = vadd.f32 %v693, %v716
      %719 = vrot.lane.b32.xlu0 %v503, 111
      %v720 = vpop.permute.xlu0 %719
      %721 = vrot.lane.b32.xlu0 %v509, 111
      %v722 = vpop.permute.xlu0 %721
      %vm723 = vcmp.lt.s32.totalorder %v516, 111
      %v724 = vsel %vm723, %v720, %v722
      %v725 = vsel %vm723, %v722, %v720
      %v726 = vlaneseq
      %v727 = vshrl.u32 %v726, 7
      %v728 = vsub.s32 0, %v727
      %v729 = vrot.slane %v469, %v728
      %v730 = vlaneseq
      %v731 = vshrl.u32 %v730, 7
      %v732 = vsub.s32 0, %v731
      %v733 = vrot.slane %v470, %v732
      %v734 = vmul.f32 %v724, %v729
      %v735 = vmul.f32 %v725, %v733
      %736 = vset.pattern.permute.xlu0 8
      %737 = vperm.xlu0 %736, %v504
      %v738 = vpop.permute.xlu0 %737
      %v740 = vmul.f32 %v734, %v738
      %v741 = vmul.f32 %v735, %v738
      %v742 = vadd.f32 %v717, %v740
      %v743 = vadd.f32 %v718, %v741
      %vm744 = vcmask 31744
      %v746 = vsel %vm744, %v505, 0
      %vm748 = vcmask 1043456
      %v750 = vsel %vm748, %v742, 0
      %v753 = vsel %vm748, %v743, 0
      %755 = vmatprep.subr.mxu0 %v753
      %756 = vmatpush1.msra.mxu0 %v750
      %757 = vmatprep.subr.mxu0 0.0
      %758 = vmatpush1.msra.mxu0 0.0
      %759 = vmatprep.subr.mxu0 0.0
      %760 = vmatpush1.msra.mxu0 0.0
      %761 = vmatprep.subr.mxu0 0.0
      %762 = vmatpush1.msra.mxu0 0.0
      %763 = vmatprep.subr.mxu0 0.0
      %764 = vmatpush1.msra.mxu0 0.0
      %765 = vmatprep.subr.mxu0 0.0
      %766 = vmatpush1.msra.mxu0 0.0
      %767 = vmatprep.subr.mxu0 0.0
      %768 = vmatpush1.msra.mxu0 0.0
      %769 = vmatprep.subr.mxu0 0.0
      %770 = vmatpush1.msra.mxu0 0.0
      %771 = vmatprep.subr.mxu0 0.0
      %772 = vmatpush1.msra.mxu0 0.0
      %773 = vmatprep.subr.mxu0 0.0
      %774 = vmatpush1.msra.mxu0 0.0
      %775 = vmatprep.subr.mxu0 0.0
      %776 = vmatpush1.msra.mxu0 0.0
      %777 = vmatprep.subr.mxu0 0.0
      %778 = vmatpush1.msra.mxu0 0.0
      %779 = vmatprep.subr.mxu0 0.0
      %780 = vmatpush1.msra.mxu0 0.0
      %781 = vmatprep.subr.mxu0 0.0
      %782 = vmatpush1.msra.mxu0 0.0
      %783 = vmatprep.subr.mxu0 0.0
      %784 = vmatpush1.msra.mxu0 0.0
      %785 = vmatprep.subr.mxu0 0.0
      %786 = vmatpush1.msra.mxu0 0.0
      %787 = vmatprep.subr.mxu0 0.0
      %788 = vmatpush1.msra.mxu0 0.0
      %789 = vmatprep.subr.mxu0 0.0
      %790 = vmatpush1.msra.mxu0 0.0
      %791 = vmatprep.subr.mxu0 0.0
      %792 = vmatpush1.msra.mxu0 0.0
      %793 = vmatprep.subr.mxu0 0.0
      %794 = vmatpush1.msra.mxu0 0.0
      %795 = vmatprep.subr.mxu0 0.0
      %796 = vmatpush1.msra.mxu0 0.0
      %797 = vmatprep.subr.mxu0 0.0
      %798 = vmatpush1.msra.mxu0 0.0
      %799 = vmatprep.subr.mxu0 0.0
      %800 = vmatpush1.msra.mxu0 0.0
      %801 = vmatprep.subr.mxu0 0.0
      %802 = vmatpush1.msra.mxu0 0.0
      %803 = vmatprep.subr.mxu0 0.0
      %804 = vmatpush1.msra.mxu0 0.0
      %805 = vmatprep.subr.mxu0 0.0
      %806 = vmatpush1.msra.mxu0 0.0
      %807 = vmatprep.subr.mxu0 0.0
      %808 = vmatpush1.msra.mxu0 0.0
      %809 = vmatprep.subr.mxu0 0.0
      %810 = vmatpush1.msra.mxu0 0.0
      %811 = vmatprep.subr.mxu0 0.0
      %812 = vmatpush1.msra.mxu0 0.0
      %813 = vmatprep.subr.mxu0 0.0
      %814 = vmatpush1.msra.mxu0 0.0
      %815 = vmatprep.subr.mxu0 0.0
      %816 = vmatpush1.msra.mxu0 0.0
      %817 = vmatprep.subr.mxu0 0.0
      %818 = vmatpush1.msra.mxu0 0.0
      %819 = vmatprep.mubr.f32.mxu0 0.0
      %820 = vmatmul.mubr.f32.gmra.mrb[0].mxu0 %v746
      %v821 = vpop.f32.mrb[0].mxu0
      %v822 = vadd.f32 0.0, %v821
      %v823 = vpop.f32.mrb[0].mxu0
      %v824 = vadd.f32 0.0, %v823
      %825 = vdwg.mxu0
      %827 = vset.pattern.permute.xlu0 0
      %828 = vperm.xlu0 %827, %v506
      %v829 = vpop.permute.xlu0 %828
      %v831 = vmul.f32 %v822, %v829
      %v832 = vmul.f32 %v824, %v829
      %834 = vset.pattern.permute.xlu0 0
      %835 = vperm.xlu0 %834, %v507
      %v836 = vpop.permute.xlu0 %835
      %v838 = vadd.f32 %v831, %v836
      %v839 = vadd.f32 %v832, %v836
      %v840 = vmax.f32 %v838, 0.0
      %v841 = vmax.f32 %v839, 0.0
      %v842 = vld [vmem:[%s7] sm:$0xff]
      %v843 = vld [vmem:[%s8] sm:$0xff]
      %v844 = vld [vmem:[%s9] sm:$0xff]
      %v845 = vld [vmem:[%s10] sm:$0xff]
      %846 = vrot.lane.b32.xlu0 %v840, 17
      %v847 = vpop.permute.xlu0 %846
      %848 = vrot.lane.b32.xlu0 %v841, 17
      %v849 = vpop.permute.xlu0 %848
      %v850 = vsel %vm517, %v847, %v849
      %v851 = vsel %vm517, %v849, %v847
      %v852 = vmul.f32 %v851, %v523
      %v853 = vmul.f32 %v850, %v527
      %855 = vset.pattern.permute.xlu0 0
      %856 = vperm.xlu0 %855, %v842
      %v857 = vpop.permute.xlu0 %856
      %v859 = vmul.f32 %v852, %v857
      %v860 = vmul.f32 %v853, %v857
      %v861 = vadd.f32 %v859, 0.0
      %v862 = vadd.f32 %v860, 0.0
      %863 = vrot.lane.b32.xlu0 %v840, 16
      %v864 = vpop.permute.xlu0 %863
      %865 = vrot.lane.b32.xlu0 %v841, 16
      %v866 = vpop.permute.xlu0 %865
      %v867 = vsel %vm543, %v864, %v866
      %v868 = vsel %vm543, %v866, %v864
      %v869 = vmul.f32 %v868, %v549
      %v870 = vmul.f32 %v867, %v553
      %871 = vset.pattern.permute.xlu0 1
      %872 = vperm.xlu0 %871, %v842
      %v873 = vpop.permute.xlu0 %872
      %v875 = vmul.f32 %v869, %v873
      %v876 = vmul.f32 %v870, %v873
      %v877 = vadd.f32 %v861, %v875
      %v878 = vadd.f32 %v862, %v876
      %879 = vrot.lane.b32.xlu0 %v840, 15
      %v880 = vpop.permute.xlu0 %879
      %881 = vrot.lane.b32.xlu0 %v841, 15
      %v882 = vpop.permute.xlu0 %881
      %v883 = vsel %vm568, %v880, %v882
      %v884 = vsel %vm568, %v882, %v880
      %v885 = vmul.f32 %v884, %v574
      %v886 = vmul.f32 %v883, %v578
      %887 = vset.pattern.permute.xlu0 2
      %888 = vperm.xlu0 %887, %v842
      %v889 = vpop.permute.xlu0 %888
      %v891 = vmul.f32 %v885, %v889
      %v892 = vmul.f32 %v886, %v889
      %v893 = vadd.f32 %v877, %v891
      %v894 = vadd.f32 %v878, %v892
      %895 = vrot.lane.b32.xlu0 %v840, 1
      %v896 = vpop.permute.xlu0 %895
      %897 = vrot.lane.b32.xlu0 %v841, 1
      %v898 = vpop.permute.xlu0 %897
      %v899 = vsel %vm593, %v896, %v898
      %v900 = vsel %vm593, %v898, %v896
      %v901 = vmul.f32 %v900, %v599
      %v902 = vmul.f32 %v899, %v603
      %903 = vset.pattern.permute.xlu0 3
      %904 = vperm.xlu0 %903, %v842
      %v905 = vpop.permute.xlu0 %904
      %v907 = vmul.f32 %v901, %v905
      %v908 = vmul.f32 %v902, %v905
      %v909 = vadd.f32 %v893, %v907
      %v910 = vadd.f32 %v894, %v908
      %v911 = vmul.f32 %v840, %v617
      %v912 = vmul.f32 %v841, %v621
      %913 = vset.pattern.permute.xlu0 4
      %914 = vperm.xlu0 %913, %v842
      %v915 = vpop.permute.xlu0 %914
      %v917 = vmul.f32 %v911, %v915
      %v918 = vmul.f32 %v912, %v915
      %v919 = vadd.f32 %v909, %v917
      %v920 = vadd.f32 %v910, %v918
      %921 = vrot.lane.b32.xlu0 %v840, 127
      %v922 = vpop.permute.xlu0 %921
      %923 = vrot.lane.b32.xlu0 %v841, 127
      %v924 = vpop.permute.xlu0 %923
      %v925 = vsel %vm648, %v922, %v924
      %v926 = vsel %vm648, %v924, %v922
      %v927 = vmul.f32 %v925, %v654
      %v928 = vmul.f32 %v926, %v658
      %929 = vset.pattern.permute.xlu0 5
      %930 = vperm.xlu0 %929, %v842
      %v931 = vpop.permute.xlu0 %930
      %v933 = vmul.f32 %v927, %v931
      %v934 = vmul.f32 %v928, %v931
      %v935 = vadd.f32 %v919, %v933
      %v936 = vadd.f32 %v920, %v934
      %937 = vrot.lane.b32.xlu0 %v840, 113
      %v938 = vpop.permute.xlu0 %937
      %939 = vrot.lane.b32.xlu0 %v841, 113
      %v940 = vpop.permute.xlu0 %939
      %v941 = vsel %vm673, %v938, %v940
      %v942 = vsel %vm673, %v940, %v938
      %v943 = vmul.f32 %v941, %v679
      %v944 = vmul.f32 %v942, %v683
      %945 = vset.pattern.permute.xlu0 6
      %946 = vperm.xlu0 %945, %v842
      %v947 = vpop.permute.xlu0 %946
      %v949 = vmul.f32 %v943, %v947
      %v950 = vmul.f32 %v944, %v947
      %v951 = vadd.f32 %v935, %v949
      %v952 = vadd.f32 %v936, %v950
      %953 = vrot.lane.b32.xlu0 %v840, 112
      %v954 = vpop.permute.xlu0 %953
      %955 = vrot.lane.b32.xlu0 %v841, 112
      %v956 = vpop.permute.xlu0 %955
      %v957 = vsel %vm698, %v954, %v956
      %v958 = vsel %vm698, %v956, %v954
      %v959 = vmul.f32 %v957, %v704
      %v960 = vmul.f32 %v958, %v708
      %961 = vset.pattern.permute.xlu0 7
      %962 = vperm.xlu0 %961, %v842
      %v963 = vpop.permute.xlu0 %962
      %v965 = vmul.f32 %v959, %v963
      %v966 = vmul.f32 %v960, %v963
      %v967 = vadd.f32 %v951, %v965
      %v968 = vadd.f32 %v952, %v966
      %969 = vrot.lane.b32.xlu0 %v840, 111
      %v970 = vpop.permute.xlu0 %969
      %971 = vrot.lane.b32.xlu0 %v841, 111
      %v972 = vpop.permute.xlu0 %971
      %v973 = vsel %vm723, %v970, %v972
      %v974 = vsel %vm723, %v972, %v970
      %v975 = vmul.f32 %v973, %v729
      %v976 = vmul.f32 %v974, %v733
      %977 = vset.pattern.permute.xlu0 8
      %978 = vperm.xlu0 %977, %v842
      %v979 = vpop.permute.xlu0 %978
      %v981 = vmul.f32 %v975, %v979
      %v982 = vmul.f32 %v976, %v979
      %v983 = vadd.f32 %v967, %v981
      %v984 = vadd.f32 %v968, %v982
      %vm985 = vcmask 64512
      %v987 = vsel %vm985, %v843, 0
      %989 = vmatprep.subr.mxu0 %v984
      %990 = vmatpush1.msra.mxu0 %v983
      %991 = vmatprep.subr.mxu0 0.0
      %992 = vmatpush1.msra.mxu0 0.0
      %993 = vmatprep.subr.mxu0 0.0
      %994 = vmatpush1.msra.mxu0 0.0
      %995 = vmatprep.subr.mxu0 0.0
      %996 = vmatpush1.msra.mxu0 0.0
      %997 = vmatprep.subr.mxu0 0.0
      %998 = vmatpush1.msra.mxu0 0.0
      %999 = vmatprep.subr.mxu0 0.0
      %1000 = vmatpush1.msra.mxu0 0.0
      %1001 = vmatprep.subr.mxu0 0.0
      %1002 = vmatpush1.msra.mxu0 0.0
      %1003 = vmatprep.subr.mxu0 0.0
      %1004 = vmatpush1.msra.mxu0 0.0
      %1005 = vmatprep.subr.mxu0 0.0
      %1006 = vmatpush1.msra.mxu0 0.0
      %1007 = vmatprep.subr.mxu0 0.0
      %1008 = vmatpush1.msra.mxu0 0.0
      %1009 = vmatprep.subr.mxu0 0.0
      %1010 = vmatpush1.msra.mxu0 0.0
      %1011 = vmatprep.subr.mxu0 0.0
      %1012 = vmatpush1.msra.mxu0 0.0
      %1013 = vmatprep.subr.mxu0 0.0
      %1014 = vmatpush1.msra.mxu0 0.0
      %1015 = vmatprep.subr.mxu0 0.0
      %1016 = vmatpush1.msra.mxu0 0.0
      %1017 = vmatprep.subr.mxu0 0.0
      %1018 = vmatpush1.msra.mxu0 0.0
      %1019 = vmatprep.subr.mxu0 0.0
      %1020 = vmatpush1.msra.mxu0 0.0
      %1021 = vmatprep.subr.mxu0 0.0
      %1022 = vmatpush1.msra.mxu0 0.0
      %1023 = vmatprep.subr.mxu0 0.0
      %1024 = vmatpush1.msra.mxu0 0.0
      %1025 = vmatprep.subr.mxu0 0.0
      %1026 = vmatpush1.msra.mxu0 0.0
      %1027 = vmatprep.subr.mxu0 0.0
      %1028 = vmatpush1.msra.mxu0 0.0
      %1029 = vmatprep.subr.mxu0 0.0
      %1030 = vmatpush1.msra.mxu0 0.0
      %1031 = vmatprep.subr.mxu0 0.0
      %1032 = vmatpush1.msra.mxu0 0.0
      %1033 = vmatprep.subr.mxu0 0.0
      %1034 = vmatpush1.msra.mxu0 0.0
      %1035 = vmatprep.subr.mxu0 0.0
      %1036 = vmatpush1.msra.mxu0 0.0
      %1037 = vmatprep.subr.mxu0 0.0
      %1038 = vmatpush1.msra.mxu0 0.0
      %1039 = vmatprep.subr.mxu0 0.0
      %1040 = vmatpush1.msra.mxu0 0.0
      %1041 = vmatprep.subr.mxu0 0.0
      %1042 = vmatpush1.msra.mxu0 0.0
      %1043 = vmatprep.subr.mxu0 0.0
      %1044 = vmatpush1.msra.mxu0 0.0
      %1045 = vmatprep.subr.mxu0 0.0
      %1046 = vmatpush1.msra.mxu0 0.0
      %1047 = vmatprep.subr.mxu0 0.0
      %1048 = vmatpush1.msra.mxu0 0.0
      %1049 = vmatprep.subr.mxu0 0.0
      %1050 = vmatpush1.msra.mxu0 0.0
      %1051 = vmatprep.subr.mxu0 0.0
      %1052 = vmatpush1.msra.mxu0 0.0
      %1053 = vmatprep.mubr.f32.mxu0 0.0
      %1054 = vmatmul.mubr.f32.gmra.mrb[0].mxu0 %v987
      %v1055 = vpop.f32.mrb[0].mxu0
      %v1056 = vadd.f32 0.0, %v1055
      %v1057 = vpop.f32.mrb[0].mxu0
      %v1058 = vadd.f32 0.0, %v1057
      %1059 = vdwg.mxu0
      %1061 = vset.pattern.permute.xlu0 0
      %1062 = vperm.xlu0 %1061, %v844
      %v1063 = vpop.permute.xlu0 %1062
      %v1065 = vmul.f32 %v1056, %v1063
      %v1066 = vmul.f32 %v1058, %v1063
      %1068 = vset.pattern.permute.xlu0 0
      %1069 = vperm.xlu0 %1068, %v845
      %v1070 = vpop.permute.xlu0 %1069
      %v1072 = vadd.f32 %v1065, %v1070
      %v1073 = vadd.f32 %v1066, %v1070
      %vm1074 = vcmp.gt.f32.partialorder %v467, 0.5
      %vm1075 = vcmp.gt.f32.partialorder %v468, 0.5
      %1076 = vrot.lane.b32.xlu0 %v1072, 17
      %v1077 = vpop.permute.xlu0 %1076
      %1078 = vrot.lane.b32.xlu0 %v1073, 17
      %v1079 = vpop.permute.xlu0 %1078
      %v1080 = vsel %vm517, %v1077, %v1079
      %v1081 = vsel %vm517, %v1079, %v1077
      %v1082 = vsel %vm1074, 1, 0
      %v1083 = vsel %vm1075, 1, 0
      %v1084 = vlaneseq
      %v1085 = vshrl.u32 %v1084, 7
      %v1086 = vsub.s32 0, %v1085
      %v1087 = vrot.slane %v1082, %v1086
      %v1088 = vlaneseq
      %v1089 = vshrl.u32 %v1088, 7
      %v1090 = vsub.s32 0, %v1089
      %v1091 = vrot.slane %v1083, %v1090
      %vm1092 = vcmp.eq.s32.totalorder %v1087, 1
      %vm1093 = vcmp.eq.s32.totalorder %v1091, 1
      %v1094 = vsel %vm1092, %v1081, -1e+30
      %v1095 = vsel %vm1093, %v1080, -1e+30
      %v1096 = vmax.f32 %v1072, %v1094
      %v1097 = vmax.f32 %v1073, %v1095
      %1098 = vrot.lane.b32.xlu0 %v1072, 16
      %v1099 = vpop.permute.xlu0 %1098
      %1100 = vrot.lane.b32.xlu0 %v1073, 16
      %v1101 = vpop.permute.xlu0 %1100
      %v1102 = vsel %vm543, %v1099, %v1101
      %v1103 = vsel %vm543, %v1101, %v1099
      %v1104 = vlaneseq
      %v1105 = vshrl.u32 %v1104, 7
      %v1106 = vsub.s32 1, %v1105
      %v1107 = vrot.slane %v1082, %v1106
      %v1108 = vlaneseq
      %v1109 = vshrl.u32 %v1108, 7
      %v1110 = vsub.s32 1, %v1109
      %v1111 = vrot.slane %v1083, %v1110
      %vm1112 = vcmp.eq.s32.totalorder %v1107, 1
      %vm1113 = vcmp.eq.s32.totalorder %v1111, 1
      %v1114 = vsel %vm1112, %v1103, -1e+30
      %v1115 = vsel %vm1113, %v1102, -1e+30
      %v1116 = vmax.f32 %v1096, %v1114
      %v1117 = vmax.f32 %v1097, %v1115
      %1118 = vrot.lane.b32.xlu0 %v1072, 15
      %v1119 = vpop.permute.xlu0 %1118
      %1120 = vrot.lane.b32.xlu0 %v1073, 15
      %v1121 = vpop.permute.xlu0 %1120
      %v1122 = vsel %vm568, %v1119, %v1121
      %v1123 = vsel %vm568, %v1121, %v1119
      %v1124 = vlaneseq
      %v1125 = vshrl.u32 %v1124, 7
      %v1126 = vsub.s32 2, %v1125
      %v1127 = vrot.slane %v1082, %v1126
      %v1128 = vlaneseq
      %v1129 = vshrl.u32 %v1128, 7
      %v1130 = vsub.s32 2, %v1129
      %v1131 = vrot.slane %v1083, %v1130
      %vm1132 = vcmp.eq.s32.totalorder %v1127, 1
      %vm1133 = vcmp.eq.s32.totalorder %v1131, 1
      %v1134 = vsel %vm1132, %v1123, -1e+30
      %v1135 = vsel %vm1133, %v1122, -1e+30
      %v1136 = vmax.f32 %v1116, %v1134
      %v1137 = vmax.f32 %v1117, %v1135
      %1138 = vrot.lane.b32.xlu0 %v1072, 1
      %v1139 = vpop.permute.xlu0 %1138
      %1140 = vrot.lane.b32.xlu0 %v1073, 1
      %v1141 = vpop.permute.xlu0 %1140
      %v1142 = vsel %vm593, %v1139, %v1141
      %v1143 = vsel %vm593, %v1141, %v1139
      %v1144 = vlaneseq
      %v1145 = vshrl.u32 %v1144, 7
      %v1146 = vsub.s32 3, %v1145
      %v1147 = vrot.slane %v1082, %v1146
      %v1148 = vlaneseq
      %v1149 = vshrl.u32 %v1148, 7
      %v1150 = vsub.s32 3, %v1149
      %v1151 = vrot.slane %v1083, %v1150
      %vm1152 = vcmp.eq.s32.totalorder %v1147, 1
      %vm1153 = vcmp.eq.s32.totalorder %v1151, 1
      %v1154 = vsel %vm1152, %v1143, -1e+30
      %v1155 = vsel %vm1153, %v1142, -1e+30
      %v1156 = vmax.f32 %v1136, %v1154
      %v1157 = vmax.f32 %v1137, %v1155
      %1158 = vrot.lane.b32.xlu0 %v1072, 127
      %v1159 = vpop.permute.xlu0 %1158
      %1160 = vrot.lane.b32.xlu0 %v1073, 127
      %v1161 = vpop.permute.xlu0 %1160
      %v1162 = vsel %vm648, %v1159, %v1161
      %v1163 = vsel %vm648, %v1161, %v1159
      %v1164 = vlaneseq
      %v1165 = vshrl.u32 %v1164, 7
      %v1166 = vsub.s32 5, %v1165
      %v1167 = vrot.slane %v1082, %v1166
      %v1168 = vlaneseq
      %v1169 = vshrl.u32 %v1168, 7
      %v1170 = vsub.s32 5, %v1169
      %v1171 = vrot.slane %v1083, %v1170
      %vm1172 = vcmp.eq.s32.totalorder %v1167, 1
      %vm1173 = vcmp.eq.s32.totalorder %v1171, 1
      %v1174 = vsel %vm1172, %v1162, -1e+30
      %v1175 = vsel %vm1173, %v1163, -1e+30
      %v1176 = vmax.f32 %v1156, %v1174
      %v1177 = vmax.f32 %v1157, %v1175
      %1178 = vrot.lane.b32.xlu0 %v1072, 113
      %v1179 = vpop.permute.xlu0 %1178
      %1180 = vrot.lane.b32.xlu0 %v1073, 113
      %v1181 = vpop.permute.xlu0 %1180
      %v1182 = vsel %vm673, %v1179, %v1181
      %v1183 = vsel %vm673, %v1181, %v1179
      %v1184 = vlaneseq
      %v1185 = vshrl.u32 %v1184, 7
      %v1186 = vsub.s32 6, %v1185
      %v1187 = vrot.slane %v1082, %v1186
      %v1188 = vlaneseq
      %v1189 = vshrl.u32 %v1188, 7
      %v1190 = vsub.s32 6, %v1189
      %v1191 = vrot.slane %v1083, %v1190
      %vm1192 = vcmp.eq.s32.totalorder %v1187, 1
      %vm1193 = vcmp.eq.s32.totalorder %v1191, 1
      %v1194 = vsel %vm1192, %v1182, -1e+30
      %v1195 = vsel %vm1193, %v1183, -1e+30
      %v1196 = vmax.f32 %v1176, %v1194
      %v1197 = vmax.f32 %v1177, %v1195
      %1198 = vrot.lane.b32.xlu0 %v1072, 112
      %v1199 = vpop.permute.xlu0 %1198
      %1200 = vrot.lane.b32.xlu0 %v1073, 112
      %v1201 = vpop.permute.xlu0 %1200
      %v1202 = vsel %vm698, %v1199, %v1201
      %v1203 = vsel %vm698, %v1201, %v1199
      %v1204 = vlaneseq
      %v1205 = vshrl.u32 %v1204, 7
      %v1206 = vsub.s32 7, %v1205
      %v1207 = vrot.slane %v1082, %v1206
      %v1208 = vlaneseq
      %v1209 = vshrl.u32 %v1208, 7
      %v1210 = vsub.s32 7, %v1209
      %v1211 = vrot.slane %v1083, %v1210
      %vm1212 = vcmp.eq.s32.totalorder %v1207, 1
      %vm1213 = vcmp.eq.s32.totalorder %v1211, 1
      %v1214 = vsel %vm1212, %v1202, -1e+30
      %v1215 = vsel %vm1213, %v1203, -1e+30
      %v1216 = vmax.f32 %v1196, %v1214
      %v1217 = vmax.f32 %v1197, %v1215
      %vm1218 = vcmp.gt.f32.partialorder %v469, 0.5
      %vm1219 = vcmp.gt.f32.partialorder %v470, 0.5
      %1220 = vrot.lane.b32.xlu0 %v1072, 111
      %v1221 = vpop.permute.xlu0 %1220
      %1222 = vrot.lane.b32.xlu0 %v1073, 111
      %v1223 = vpop.permute.xlu0 %1222
      %v1224 = vsel %vm723, %v1221, %v1223
      %v1225 = vsel %vm723, %v1223, %v1221
      %v1226 = vsel %vm1218, 1, 0
      %v1227 = vsel %vm1219, 1, 0
      %v1228 = vlaneseq
      %v1229 = vshrl.u32 %v1228, 7
      %v1230 = vsub.s32 0, %v1229
      %v1231 = vrot.slane %v1226, %v1230
      %v1232 = vlaneseq
      %v1233 = vshrl.u32 %v1232, 7
      %v1234 = vsub.s32 0, %v1233
      %v1235 = vrot.slane %v1227, %v1234
      %vm1236 = vcmp.eq.s32.totalorder %v1231, 1
      %vm1237 = vcmp.eq.s32.totalorder %v1235, 1
      %v1238 = vsel %vm1236, %v1224, -1e+30
      %v1239 = vsel %vm1237, %v1225, -1e+30
      %v1240 = vmax.f32 %v1216, %v1238
      %v1241 = vmax.f32 %v1217, %v1239
      %v1243 = vcombine.high %v466, %v466
      %1245 = vmatprep.subr.mxu0 0.0
      %1246 = vmatpush1.msra.mxu0 %v471
      %1247 = vmatprep.subr.mxu0 0.0
      %1248 = vmatpush1.msra.mxu0 %v472
      %1249 = vmatprep.subr.mxu0 0.0
      %1250 = vmatpush1.msra.mxu0 %v473
      %1251 = vmatprep.subr.mxu0 0.0
      %1252 = vmatpush1.msra.mxu0 %v474
      %1253 = vmatprep.subr.mxu0 0.0
      %1254 = vmatpush1.msra.mxu0 %v475
      %1255 = vmatprep.subr.mxu0 0.0
      %1256 = vmatpush1.msra.mxu0 %v476
      %1257 = vmatprep.subr.mxu0 0.0
      %1258 = vmatpush1.msra.mxu0 %v477
      %1259 = vmatprep.subr.mxu0 0.0
      %1260 = vmatpush1.msra.mxu0 %v478
      %1261 = vmatprep.subr.mxu0 0.0
      %1262 = vmatpush1.msra.mxu0 %v479
      %1263 = vmatprep.subr.mxu0 0.0
      %1264 = vmatpush1.msra.mxu0 %v480
      %1265 = vmatprep.subr.mxu0 0.0
      %1266 = vmatpush1.msra.mxu0 %v481
      %1267 = vmatprep.subr.mxu0 0.0
      %1268 = vmatpush1.msra.mxu0 %v482
      %1269 = vmatprep.subr.mxu0 0.0
      %1270 = vmatpush1.msra.mxu0 %v483
      %1271 = vmatprep.subr.mxu0 0.0
      %1272 = vmatpush1.msra.mxu0 %v484
      %1273 = vmatprep.subr.mxu0 0.0
      %1274 = vmatpush1.msra.mxu0 %v485
      %1275 = vmatprep.subr.mxu0 0.0
      %1276 = vmatpush1.msra.mxu0 %v486
      %1277 = vmatprep.subr.mxu0 0.0
      %1278 = vmatpush1.msra.mxu0 %v487
      %1279 = vmatprep.subr.mxu0 0.0
      %1280 = vmatpush1.msra.mxu0 %v488
      %1281 = vmatprep.subr.mxu0 0.0
      %1282 = vmatpush1.msra.mxu0 %v489
      %1283 = vmatprep.subr.mxu0 0.0
      %1284 = vmatpush1.msra.mxu0 %v490
      %1285 = vmatprep.subr.mxu0 0.0
      %1286 = vmatpush1.msra.mxu0 %v491
      %1287 = vmatprep.subr.mxu0 0.0
      %1288 = vmatpush1.msra.mxu0 %v492
      %1289 = vmatprep.subr.mxu0 0.0
      %1290 = vmatpush1.msra.mxu0 %v493
      %1291 = vmatprep.subr.mxu0 0.0
      %1292 = vmatpush1.msra.mxu0 %v494
      %1293 = vmatprep.subr.mxu0 0.0
      %1294 = vmatpush1.msra.mxu0 %v495
      %1295 = vmatprep.subr.mxu0 0.0
      %1296 = vmatpush1.msra.mxu0 %v496
      %1297 = vmatprep.subr.mxu0 0.0
      %1298 = vmatpush1.msra.mxu0 %v497
      %1299 = vmatprep.subr.mxu0 0.0
      %1300 = vmatpush1.msra.mxu0 %v498
      %1301 = vmatprep.subr.mxu0 0.0
      %1302 = vmatpush1.msra.mxu0 %v499
      %1303 = vmatprep.subr.mxu0 0.0
      %1304 = vmatpush1.msra.mxu0 %v500
      %1305 = vmatprep.subr.mxu0 0.0
      %1306 = vmatpush1.msra.mxu0 %v501
      %1307 = vmatprep.subr.mxu0 0.0
      %1308 = vmatpush1.msra.mxu0 %v502
      %1309 = vmatprep.mubr.f32.mxu0 %v1243
      %1310 = vmatmul.mubr.f32.gmra.mrb[0].mxu0 %v466
      %v1311 = vpop.f32.mrb[0].mxu0
      %v1312 = vadd.f32 0.0, %v1311
      %v1313 = vpop.f32.mrb[0].mxu0
      %1314 = vdwg.mxu0
      %v1315 = vld [vmem:[%s11] sm:$0xff]
      %v1317 = vsel %vm744, %v1315, 0
      %v1320 = vsel %vm748, %v1312, 0
      %1322 = vmatprep.subr.mxu0 0.0
      %1323 = vmatpush1.msra.mxu0 %v1320
      %1324 = vmatprep.subr.mxu0 0.0
      %1325 = vmatpush1.msra.mxu0 0.0
      %1326 = vmatprep.subr.mxu0 0.0
      %1327 = vmatpush1.msra.mxu0 0.0
      %1328 = vmatprep.subr.mxu0 0.0
      %1329 = vmatpush1.msra.mxu0 0.0
      %1330 = vmatprep.subr.mxu0 0.0
      %1331 = vmatpush1.msra.mxu0 0.0
      %1332 = vmatprep.subr.mxu0 0.0
      %1333 = vmatpush1.msra.mxu0 0.0
      %1334 = vmatprep.subr.mxu0 0.0
      %1335 = vmatpush1.msra.mxu0 0.0
      %1336 = vmatprep.subr.mxu0 0.0
      %1337 = vmatpush1.msra.mxu0 0.0
      %1338 = vmatprep.subr.mxu0 0.0
      %1339 = vmatpush1.msra.mxu0 0.0
      %1340 = vmatprep.subr.mxu0 0.0
      %1341 = vmatpush1.msra.mxu0 0.0
      %1342 = vmatprep.subr.mxu0 0.0
      %1343 = vmatpush1.msra.mxu0 0.0
      %1344 = vmatprep.subr.mxu0 0.0
      %1345 = vmatpush1.msra.mxu0 0.0
      %1346 = vmatprep.subr.mxu0 0.0
      %1347 = vmatpush1.msra.mxu0 0.0
      %1348 = vmatprep.subr.mxu0 0.0
      %1349 = vmatpush1.msra.mxu0 0.0
      %1350 = vmatprep.subr.mxu0 0.0
      %1351 = vmatpush1.msra.mxu0 0.0
      %1352 = vmatprep.subr.mxu0 0.0
      %1353 = vmatpush1.msra.mxu0 0.0
      %1354 = vmatprep.subr.mxu0 0.0
      %1355 = vmatpush1.msra.mxu0 0.0
      %1356 = vmatprep.subr.mxu0 0.0
      %1357 = vmatpush1.msra.mxu0 0.0
      %1358 = vmatprep.subr.mxu0 0.0
      %1359 = vmatpush1.msra.mxu0 0.0
      %1360 = vmatprep.subr.mxu0 0.0
      %1361 = vmatpush1.msra.mxu0 0.0
      %1362 = vmatprep.subr.mxu0 0.0
      %1363 = vmatpush1.msra.mxu0 0.0
      %1364 = vmatprep.subr.mxu0 0.0
      %1365 = vmatpush1.msra.mxu0 0.0
      %1366 = vmatprep.subr.mxu0 0.0
      %1367 = vmatpush1.msra.mxu0 0.0
      %1368 = vmatprep.subr.mxu0 0.0
      %1369 = vmatpush1.msra.mxu0 0.0
      %1370 = vmatprep.subr.mxu0 0.0
      %1371 = vmatpush1.msra.mxu0 0.0
      %1372 = vmatprep.subr.mxu0 0.0
      %1373 = vmatpush1.msra.mxu0 0.0
      %1374 = vmatprep.subr.mxu0 0.0
      %1375 = vmatpush1.msra.mxu0 0.0
      %1376 = vmatprep.subr.mxu0 0.0
      %1377 = vmatpush1.msra.mxu0 0.0
      %1378 = vmatprep.subr.mxu0 0.0
      %1379 = vmatpush1.msra.mxu0 0.0
      %1380 = vmatprep.subr.mxu0 0.0
      %1381 = vmatpush1.msra.mxu0 0.0
      %1382 = vmatprep.subr.mxu0 0.0
      %1383 = vmatpush1.msra.mxu0 0.0
      %1384 = vmatprep.subr.mxu0 0.0
      %1385 = vmatpush1.msra.mxu0 0.0
      %1386 = vmatprep.mubr.f32.mxu0 0.0
      %1387 = vmatmul.mubr.f32.gmra.mrb[0].mxu0 %v1317
      %v1388 = vpop.f32.mrb[0].mxu0
      %v1389 = vadd.f32 0.0, %v1388
      %v1390 = vpop.f32.mrb[0].mxu0
      %1391 = vdwg.mxu0
      %v1392 = vld [vmem:[%s12] sm:$0xff]
      %1394 = vset.pattern.permute.xlu0 0
      %1395 = vperm.xlu0 %1394, %v1392
      %v1396 = vpop.permute.xlu0 %1395
      %v1398 = vmul.f32 %v1389, %v1396
      %v1399 = vld [vmem:[%s13] sm:$0xff]
      %1401 = vset.pattern.permute.xlu0 0
      %1402 = vperm.xlu0 %1401, %v1399
      %v1403 = vpop.permute.xlu0 %1402
      %v1405 = vadd.f32 %v1398, %v1403
      %1406 = vmatprep.subr.mxu0 0.0
      %1407 = vmatpush1.msra.mxu0 %v471
      %1408 = vmatprep.subr.mxu0 0.0
      %1409 = vmatpush1.msra.mxu0 %v472
      %1410 = vmatprep.subr.mxu0 0.0
      %1411 = vmatpush1.msra.mxu0 %v473
      %1412 = vmatprep.subr.mxu0 0.0
      %1413 = vmatpush1.msra.mxu0 %v474
      %1414 = vmatprep.subr.mxu0 0.0
      %1415 = vmatpush1.msra.mxu0 %v475
      %1416 = vmatprep.subr.mxu0 0.0
      %1417 = vmatpush1.msra.mxu0 %v476
      %1418 = vmatprep.subr.mxu0 0.0
      %1419 = vmatpush1.msra.mxu0 %v477
      %1420 = vmatprep.subr.mxu0 0.0
      %1421 = vmatpush1.msra.mxu0 %v478
      %1422 = vmatprep.subr.mxu0 0.0
      %1423 = vmatpush1.msra.mxu0 %v479
      %1424 = vmatprep.subr.mxu0 0.0
      %1425 = vmatpush1.msra.mxu0 %v480
      %1426 = vmatprep.subr.mxu0 0.0
      %1427 = vmatpush1.msra.mxu0 %v481
      %1428 = vmatprep.subr.mxu0 0.0
      %1429 = vmatpush1.msra.mxu0 %v482
      %1430 = vmatprep.subr.mxu0 0.0
      %1431 = vmatpush1.msra.mxu0 %v483
      %1432 = vmatprep.subr.mxu0 0.0
      %1433 = vmatpush1.msra.mxu0 %v484
      %1434 = vmatprep.subr.mxu0 0.0
      %1435 = vmatpush1.msra.mxu0 %v485
      %1436 = vmatprep.subr.mxu0 0.0
      %1437 = vmatpush1.msra.mxu0 %v486
      %1438 = vmatprep.subr.mxu0 0.0
      %1439 = vmatpush1.msra.mxu0 %v487
      %1440 = vmatprep.subr.mxu0 0.0
      %1441 = vmatpush1.msra.mxu0 %v488
      %1442 = vmatprep.subr.mxu0 0.0
      %1443 = vmatpush1.msra.mxu0 %v489
      %1444 = vmatprep.subr.mxu0 0.0
      %1445 = vmatpush1.msra.mxu0 %v490
      %1446 = vmatprep.subr.mxu0 0.0
      %1447 = vmatpush1.msra.mxu0 %v491
      %1448 = vmatprep.subr.mxu0 0.0
      %1449 = vmatpush1.msra.mxu0 %v492
      %1450 = vmatprep.subr.mxu0 0.0
      %1451 = vmatpush1.msra.mxu0 %v493
      %1452 = vmatprep.subr.mxu0 0.0
      %1453 = vmatpush1.msra.mxu0 %v494
      %1454 = vmatprep.subr.mxu0 0.0
      %1455 = vmatpush1.msra.mxu0 %v495
      %1456 = vmatprep.subr.mxu0 0.0
      %1457 = vmatpush1.msra.mxu0 %v496
      %1458 = vmatprep.subr.mxu0 0.0
      %1459 = vmatpush1.msra.mxu0 %v497
      %1460 = vmatprep.subr.mxu0 0.0
      %1461 = vmatpush1.msra.mxu0 %v498
      %1462 = vmatprep.subr.mxu0 0.0
      %1463 = vmatpush1.msra.mxu0 %v499
      %1464 = vmatprep.subr.mxu0 0.0
      %1465 = vmatpush1.msra.mxu0 %v500
      %1466 = vmatprep.subr.mxu0 0.0
      %1467 = vmatpush1.msra.mxu0 %v501
      %1468 = vmatprep.subr.mxu0 0.0
      %1469 = vmatpush1.msra.mxu0 %v502
      %1470 = vmatprep.mubr.f32.mxu0 %v1241
      %1471 = vmatmul.mubr.f32.gmra.mrb[0].mxu0 %v1240
      %v1472 = vpop.f32.mrb[0].mxu0
      %v1473 = vadd.f32 %v1405, %v1472
      %v1474 = vpop.f32.mrb[0].mxu0
      %1475 = vdwg.mxu0
      %vm1476 = vcmask 523264
      %1477 = vst.msk [vmem:[%s465] sm:$0xff] %vm1476, %v1473
      %p1478 = scmp.lt.s32.totalorder %s25, 1
      %s1479 = scalar_select %p1478, %s25, 1
      %s1480 = smul.addr %s1479, 8
      %s1481 = scalar_lea.vmem %s14, %s1480
      // Predicated region
      $region77: #{block_forward.1} parent=75 // pred_check
        %p1482 = pneg %p342
      $region78: #{block_forward.1} parent=75 // pred_check_branch
        %1484 = sbr.rel (%p1482) target = $region80
      $region79: #{block_forward.1} parent=75 // pred_region
        _
      $region80: #{block_forward.1} parent=75 // pred_fallthru
        _
    $region76: #{block_forward.1} parent=5 // pred_fallthru
      _
    %p1485 = scmp.le.s32.totalorder 2, %s20
    // Predicated region
    $region81: #{block_forward.1} parent=5 // pred_check
      %p1486 = pneg %p1485
    $region82: #{block_forward.1} parent=5 // pred_check_branch
      %1488 = sbr.rel (%p1486) target = $region84
    $region83: #{block_forward.1} parent=5 // pred_region
      %s1489 = ssub.s32 %s20, 2
      // Predicated region
      $region85: #{block_forward.1} parent=83 // pred_check
        %p1490 = pneg %p348
      $region86: #{block_forward.1} parent=83 // pred_check_branch
        %1492 = sbr.rel (%p1490) target = $region88
      $region87: #{block_forward.1} parent=83 // pred_region
        %p1493 = scmp.lt.s32.totalorder %s26, 1
        %s1494 = scalar_select %p1493, %s26, 1
        %s1495 = smul.addr %s1494, 8
        %s1496 = scalar_lea.vmem %s14, %s1495
      $region88: #{block_forward.1} parent=83 // pred_fallthru
        _
    $region84: #{block_forward.1} parent=5 // pred_fallthru
      _
  $region6: #{block_forward.1} parent=0 // loop_footer
    %s24 = sadd.s32 1, %s20
  $region7: #{block_forward.1} parent=0 // loop_footer_branch
    %19 = sbr.rel target = $region3
  $region8: #{block_forward.1} parent=0 // loop_exit
    _

</llo_original>
